<compile_context>
chip_gen: v7x
topology: tpu7x:2x2x1
jax: 0.10.0
libtpu: 0.0.40
codegen_flags: <defaults>
</compile_context>

<pallas_src>
import math

import jax
import jax.numpy as jnp
from jax.experimental import pallas as pl

# ----- model config (small, consistent with the module) -----
B = 2            # batch
T = 8            # sequence length
C = 32           # n_embed
N_HEADS = 4
HEAD = C // N_HEADS
BT = B * T
HID = 4 * C
EPS = 1e-5       # PyTorch nn.LayerNorm default
LANES = 128
NEG = -1e30


# ----- parameter-slab layout (all starts 8-row aligned; static in-kernel offsets) -----
def _build_layout():
    layout = {}
    row = 0

    def alloc(name, rows, lanes):
        nonlocal row
        layout[name] = (row, rows, lanes)
        row += ((rows + 7) // 8) * 8

    alloc('wqkv', N_HEADS * C, 3 * HEAD)   # (128, 24) -> (NH, C, 3*HEAD), scale folded into Q
    alloc('ln1',  2, C)                    # rows: [gain; bias]
    alloc('wp',   N_HEADS * HEAD, C)       # (32, 32)  -> (NH, HEAD, C)
    alloc('bp',   1, C)
    alloc('w1',   C, HID)                  # LN2 gain folded in
    alloc('b1',   1, HID)                  # LN2 bias folded in
    alloc('w2',   HID, C)
    alloc('b2',   1, C)
    alloc('mask', BT, BT)                  # additive causal + block-diagonal (batch) mask
    return layout, row


_LAYOUT, SLAB_ROWS = _build_layout()       # SLAB_ROWS == 368


def _layernorm(v, g, b):
    mu = jnp.mean(v, axis=-1, keepdims=True)
    var = jnp.mean((v - mu) ** 2, axis=-1, keepdims=True)
    return (v - mu) * jax.lax.rsqrt(var + EPS) * g + b


# ----- kernel -----
def block_kernel(x_ref, p_ref, o_ref):
    f32 = jnp.float32

    def lp(name):                          # static slab sub-view load (8-row-aligned starts)
        r0, rows, lanes = _LAYOUT[name]
        return p_ref[r0:r0 + rows, 0:lanes]

    def norm(v):                           # LayerNorm without affine
        mu = jnp.mean(v, axis=-1, keepdims=True)
        var = jnp.mean((v - mu) ** 2, axis=-1, keepdims=True)
        return (v - mu) * jax.lax.rsqrt(var + EPS)

    x = x_ref[...].astype(f32)                                    # (BT, C)

    # ---- x = x + MHA(LN1(x)) ----
    ln1 = lp('ln1')                                               # (2, C): gain row, bias row
    xn1 = norm(x) * ln1[0:1, :] + ln1[1:2, :]
    xn1_b = jnp.broadcast_to(xn1, (N_HEADS, BT, C))               # heads as leading batch dim

    wqkv = lp('wqkv').reshape(N_HEADS, C, 3 * HEAD)               # 8-aligned sublane split
    qkv = jnp.einsum('hnc,hcd->hnd', xn1_b, wqkv,
                     preferred_element_type=f32)                  # (NH, BT, 3*HEAD)
    q = qkv[:, :, 0:HEAD]
    k = qkv[:, :, HEAD:2 * HEAD]
    v = qkv[:, :, 2 * HEAD:3 * HEAD]

    # Scores over the full flattened (b, t) token axis; the additive mask removes
    # cross-batch attention and enforces causality (each row keeps its diagonal entry,
    # so the row max stays finite and masked terms underflow to exactly 0).
    s = jnp.einsum('hnd,hmd->hnm', q, k, preferred_element_type=f32)      # (NH, BT, BT)
    s = s + lp('mask')
    m = jnp.max(s, axis=-1, keepdims=True)
    e = jnp.exp(s - m)
    p = e * pl.reciprocal(jnp.sum(e, axis=-1, keepdims=True), approx=True)
    o_att = jnp.einsum('hnm,hmd->hnd', p, v, preferred_element_type=f32)  # (NH, BT, HEAD)

    wp = lp('wp').reshape(N_HEADS, HEAD, C)                       # (NH, HEAD, C)
    proj_h = jnp.einsum('hnd,hdc->hnc', o_att, wp, preferred_element_type=f32)
    x1 = x + jnp.sum(proj_h, axis=0) + lp('bp')                   # residual 1

    # ---- x = x + FFN(LN2(x))   (LN2 affine pre-folded into w1 / b1) ----
    h1 = jnp.dot(norm(x1), lp('w1'), preferred_element_type=f32) + lp('b1')
    h1 = jnp.maximum(h1, 0.0)                                     # ReLU
    ff = jnp.dot(h1, lp('w2'), preferred_element_type=f32) + lp('b2')

    o_ref[...] = (x1 + ff).astype(o_ref.dtype)


# ----- host-side packing -----
def pack_params(params):
    """Pack the 13 parameter tensors + attention mask into one (SLAB_ROWS, 128) f32 slab."""
    (ln1g, ln1b, wq, wk, wv, wp, bp, ln2g, ln2b, w1, b1, w2, b2) = params
    scale = 1.0 / math.sqrt(HEAD)

    def per_head(w):                        # (C, C) columns ordered (head, dim) -> (NH, C, HEAD)
        return w.reshape(C, N_HEADS, HEAD).transpose(1, 0, 2)

    wqkv_h = jnp.concatenate([per_head(wq * scale), per_head(wk), per_head(wv)], axis=-1)

    # Fold LN2 affine into the first FFN linear: LN2(x)@W1 + b1 == norm2@(g*W1) + (b@W1 + b1)
    w1_f = w1 * ln2g.reshape(C, 1)
    b1_f = b1 + ln2b @ w1

    # Additive mask over the flattened token axis: causal within a batch element,
    # -1e30 across batch elements.
    n = jnp.arange(BT)
    ok = ((n[:, None] // T) == (n[None, :] // T)) & ((n[None, :] % T) <= (n[:, None] % T))
    mask = jnp.where(ok, 0.0, NEG).astype(jnp.float32)

    pieces = {
        'wqkv': wqkv_h.reshape(N_HEADS * C, 3 * HEAD),
        'ln1':  jnp.concatenate([ln1g, ln1b], axis=0),
        'wp':   wp,                          # rows already ordered (head, head_dim)
        'bp':   bp,
        'w1':   w1_f,
        'b1':   b1_f,
        'w2':   w2,
        'b2':   b2,
        'mask': mask,
    }
    slab = jnp.zeros((SLAB_ROWS, LANES), jnp.float32)
    for name, arr in pieces.items():
        r0, rows, lanes = _LAYOUT[name]
        assert arr.shape == (rows, lanes), (name, arr.shape, (rows, lanes))
        slab = slab.at[r0:r0 + rows, 0:lanes].set(arr.astype(jnp.float32))
    return slab


@jax.jit
def block_forward(x, slab):
    out = pl.pallas_call(
        block_kernel,
        out_shape=jax.ShapeDtypeStruct((BT, C), x.dtype),
    )(x.reshape(BT, C), slab)
    return out.reshape(B, T, C)


# ----- pure-JAX reference (PyTorch Block semantics, eval mode) -----
def reference_forward(x, params):
    (ln1g, ln1b, wq, wk, wv, wp, bp, ln2g, ln2b, w1, b1, w2, b2) = params
    xn = _layernorm(x, ln1g, ln1b)
    q = xn @ wq
    k = xn @ wk
    v = xn @ wv

    def split(a):
        return a.reshape(B, T, N_HEADS, HEAD).transpose(0, 2, 1, 3)

    qh, kh, vh = split(q), split(k), split(v)
    s = jnp.einsum('bhqd,bhkd->bhqk', qh, kh) / math.sqrt(HEAD)
    mask = jnp.tril(jnp.ones((T, T), dtype=bool))
    s = jnp.where(mask, s, -jnp.inf)
    p = jax.nn.softmax(s, axis=-1)
    att = jnp.einsum('bhqk,bhkd->bhqd', p, vh).transpose(0, 2, 1, 3).reshape(B, T, C)
    x1 = x + (att @ wp + bp)
    xn2 = _layernorm(x1, ln2g, ln2b)
    ff = jnp.maximum(xn2 @ w1 + b1, 0.0) @ w2 + b2
    return x1 + ff


def init_params(key):
    ks = jax.random.split(key, 8)
    scale = 0.02
    ln1g = jnp.ones((1, C), jnp.float32)
    ln1b = jnp.zeros((1, C), jnp.float32)
    ln2g = jnp.ones((1, C), jnp.float32)
    ln2b = jnp.zeros((1, C), jnp.float32)
    wq = scale * jax.random.normal(ks[0], (C, C), jnp.float32)
    wk = scale * jax.random.normal(ks[1], (C, C), jnp.float32)
    wv = scale * jax.random.normal(ks[2], (C, C), jnp.float32)
    wp = scale * jax.random.normal(ks[3], (C, C), jnp.float32)
    bp = scale * jax.random.normal(ks[4], (1, C), jnp.float32)
    w1 = scale * jax.random.normal(ks[5], (C, HID), jnp.float32)
    b1 = scale * jax.random.normal(ks[6], (1, HID), jnp.float32)
    w2 = scale * jax.random.normal(ks[7], (HID, C), jnp.float32)
    b2 = jnp.zeros((1, C), jnp.float32)
    return (ln1g, ln1b, wq, wk, wv, wp, bp, ln2g, ln2b, w1, b1, w2, b2)


if __name__ == "__main__":
    key = jax.random.PRNGKey(0)
    kx, kp = jax.random.split(key)
    x = jax.random.normal(kx, (B, T, C), jnp.float32)
    params = init_params(kp)

    out = jax.block_until_ready(block_forward(x, pack_params(params)))

    ref = reference_forward(x, params)
    assert out.shape == (B, T, C)
    # Slightly relaxed tolerance: pl.reciprocal(approx=True) is an EUP approximation.
    assert jnp.allclose(out, ref, atol=2e-4, rtol=2e-4), \
        f"max abs err {jnp.max(jnp.abs(out - ref))}"

    print("KERNEL_OK")
</pallas_src>

<mosaic_0001>
module attributes {stable_mosaic.version = 11 : i64} {
  func.func @block_kernel(%arg0: memref<16x32xf32, #tpu.memory_space<vmem>>, %arg1: memref<368x128xf32, #tpu.memory_space<vmem>>, %arg2: memref<16x32xf32, #tpu.memory_space<vmem>>) attributes {dimension_semantics = [], scalar_prefetch = 0 : i64, scratch_operands = 0 : i64, tpu.core_type = #tpu.core_type<tc>} {
    %c0 = arith.constant 0 : index
    %c0_0 = arith.constant 0 : index
    %0 = vector.load %arg0[%c0, %c0_0] : memref<16x32xf32, #tpu.memory_space<vmem>>, vector<16x32xf32>
    %c128 = arith.constant 128 : index
    %c0_1 = arith.constant 0 : index
    %1 = vector.load %arg1[%c128, %c0_1] : memref<368x128xf32, #tpu.memory_space<vmem>>, vector<2x32xf32>
    %cst = arith.constant dense<0.000000e+00> : vector<16xf32>
    %2 = vector.multi_reduction <add>, %0, %cst [1] : vector<16x32xf32> to vector<16xf32>
    %3 = vector.shape_cast %2 : vector<16xf32> to vector<16x1xf32>
    %cst_2 = arith.constant 3.200000e+01 : f32
    %4 = vector.broadcast %cst_2 : f32 to vector<16x1xf32>
    %5 = arith.divf %3, %4 : vector<16x1xf32>
    %6 = vector.broadcast %5 : vector<16x1xf32> to vector<16x32xf32>
    %7 = arith.subf %0, %6 : vector<16x32xf32>
    %8 = arith.mulf %7, %7 : vector<16x32xf32>
    %cst_3 = arith.constant dense<0.000000e+00> : vector<16xf32>
    %9 = vector.multi_reduction <add>, %8, %cst_3 [1] : vector<16x32xf32> to vector<16xf32>
    %10 = vector.shape_cast %9 : vector<16xf32> to vector<16x1xf32>
    %cst_4 = arith.constant 3.200000e+01 : f32
    %11 = vector.broadcast %cst_4 : f32 to vector<16x1xf32>
    %12 = arith.divf %10, %11 : vector<16x1xf32>
    %13 = vector.broadcast %5 : vector<16x1xf32> to vector<16x32xf32>
    %14 = arith.subf %0, %13 : vector<16x32xf32>
    %cst_5 = arith.constant 9.99999974E-6 : f32
    %15 = vector.broadcast %cst_5 : f32 to vector<16x1xf32>
    %16 = arith.addf %12, %15 : vector<16x1xf32>
    %17 = math.rsqrt %16 : vector<16x1xf32>
    %18 = vector.broadcast %17 : vector<16x1xf32> to vector<16x32xf32>
    %19 = arith.mulf %14, %18 : vector<16x32xf32>
    %20 = vector.extract_strided_slice %1 {offsets = [0, 0], sizes = [1, 32], strides = [1, 1]} : vector<2x32xf32> to vector<1x32xf32>
    %21 = vector.broadcast %20 : vector<1x32xf32> to vector<16x32xf32>
    %22 = arith.mulf %19, %21 : vector<16x32xf32>
    %23 = vector.extract_strided_slice %1 {offsets = [1, 0], sizes = [1, 32], strides = [1, 1]} : vector<2x32xf32> to vector<1x32xf32>
    %24 = vector.broadcast %23 : vector<1x32xf32> to vector<16x32xf32>
    %25 = arith.addf %22, %24 : vector<16x32xf32>
    %26 = vector.shape_cast %25 : vector<16x32xf32> to vector<1x16x32xf32>
    %27 = vector.broadcast %26 : vector<1x16x32xf32> to vector<4x16x32xf32>
    %c0_6 = arith.constant 0 : index
    %c0_7 = arith.constant 0 : index
    %28 = vector.load %arg1[%c0_6, %c0_7] : memref<368x128xf32, #tpu.memory_space<vmem>>, vector<128x24xf32>
    %29 = vector.shape_cast %28 : vector<128x24xf32> to vector<4x32x24xf32>
    "tpu.trace_start"() <{level = 10 : i32, message = "hnc,hcd->hnd"}> : () -> ()
    %cst_8 = arith.constant dense<0.000000e+00> : vector<4x16x24xf32>
    %30 = tpu.matmul %27, %29, %cst_8 {dimension_numbers = #tpu.dot_dimension_numbers<[2], [1], [1], [2], [0, 0, 0, 1, 1, 2], [0], [0]>} : vector<4x16x32xf32>, vector<4x32x24xf32>, vector<4x16x24xf32> -> vector<4x16x24xf32>
    "tpu.trace_stop"() : () -> ()
    %31 = vector.extract_strided_slice %30 {offsets = [0, 0, 0], sizes = [4, 16, 8], strides = [1, 1, 1]} : vector<4x16x24xf32> to vector<4x16x8xf32>
    %32 = vector.extract_strided_slice %30 {offsets = [0, 0, 8], sizes = [4, 16, 8], strides = [1, 1, 1]} : vector<4x16x24xf32> to vector<4x16x8xf32>
    %33 = vector.extract_strided_slice %30 {offsets = [0, 0, 16], sizes = [4, 16, 8], strides = [1, 1, 1]} : vector<4x16x24xf32> to vector<4x16x8xf32>
    "tpu.trace_start"() <{level = 10 : i32, message = "hnd,hmd->hnm"}> : () -> ()
    %cst_9 = arith.constant dense<0.000000e+00> : vector<4x16x16xf32>
    %34 = tpu.matmul %31, %32, %cst_9 {dimension_numbers = #tpu.dot_dimension_numbers<[2], [2], [1], [1], [0, 0, 0, 1, 1, 1], [0], [0]>} : vector<4x16x8xf32>, vector<4x16x8xf32>, vector<4x16x16xf32> -> vector<4x16x16xf32>
    "tpu.trace_stop"() : () -> ()
    %c352 = arith.constant 352 : index
    %c0_10 = arith.constant 0 : index
    %35 = vector.load %arg1[%c352, %c0_10] : memref<368x128xf32, #tpu.memory_space<vmem>>, vector<16x16xf32>
    %36 = vector.shape_cast %35 : vector<16x16xf32> to vector<1x16x16xf32>
    %37 = vector.broadcast %36 : vector<1x16x16xf32> to vector<4x16x16xf32>
    %38 = arith.addf %34, %37 : vector<4x16x16xf32>
    %cst_11 = arith.constant dense<0xFF800000> : vector<4x16xf32>
    %39 = vector.multi_reduction <maximumf>, %38, %cst_11 [2] : vector<4x16x16xf32> to vector<4x16xf32>
    %40 = vector.shape_cast %39 : vector<4x16xf32> to vector<4x16x1xf32>
    %41 = vector.broadcast %40 : vector<4x16x1xf32> to vector<4x16x16xf32>
    %42 = arith.subf %38, %41 : vector<4x16x16xf32>
    %43 = math.exp %42 : vector<4x16x16xf32>
    %cst_12 = arith.constant dense<0.000000e+00> : vector<4x16xf32>
    %44 = vector.multi_reduction <add>, %43, %cst_12 [2] : vector<4x16x16xf32> to vector<4x16xf32>
    %45 = vector.shape_cast %44 : vector<4x16xf32> to vector<4x16x1xf32>
    %46 = tpu.reciprocal %45 {approx = true} : vector<4x16x1xf32> -> vector<4x16x1xf32>
    %47 = vector.broadcast %46 : vector<4x16x1xf32> to vector<4x16x16xf32>
    %48 = arith.mulf %43, %47 : vector<4x16x16xf32>
    "tpu.trace_start"() <{level = 10 : i32, message = "hnm,hmd->hnd"}> : () -> ()
    %cst_13 = arith.constant dense<0.000000e+00> : vector<4x16x8xf32>
    %49 = tpu.matmul %48, %33, %cst_13 {dimension_numbers = #tpu.dot_dimension_numbers<[2], [1], [1], [2], [0, 0, 0, 1, 1, 2], [0], [0]>} : vector<4x16x16xf32>, vector<4x16x8xf32>, vector<4x16x8xf32> -> vector<4x16x8xf32>
    "tpu.trace_stop"() : () -> ()
    %c136 = arith.constant 136 : index
    %c0_14 = arith.constant 0 : index
    %50 = vector.load %arg1[%c136, %c0_14] : memref<368x128xf32, #tpu.memory_space<vmem>>, vector<32x32xf32>
    %51 = vector.shape_cast %50 : vector<32x32xf32> to vector<4x8x32xf32>
    "tpu.trace_start"() <{level = 10 : i32, message = "hnd,hdc->hnc"}> : () -> ()
    %cst_15 = arith.constant dense<0.000000e+00> : vector<4x16x32xf32>
    %52 = tpu.matmul %49, %51, %cst_15 {dimension_numbers = #tpu.dot_dimension_numbers<[2], [1], [1], [2], [0, 0, 0, 1, 1, 2], [0], [0]>} : vector<4x16x8xf32>, vector<4x8x32xf32>, vector<4x16x32xf32> -> vector<4x16x32xf32>
    "tpu.trace_stop"() : () -> ()
    %cst_16 = arith.constant dense<0.000000e+00> : vector<16x32xf32>
    %53 = vector.multi_reduction <add>, %52, %cst_16 [0] : vector<4x16x32xf32> to vector<16x32xf32>
    %54 = arith.addf %0, %53 : vector<16x32xf32>
    %c168 = arith.constant 168 : index
    %c0_17 = arith.constant 0 : index
    %55 = vector.load %arg1[%c168, %c0_17] : memref<368x128xf32, #tpu.memory_space<vmem>>, vector<1x32xf32>
    %56 = vector.broadcast %55 : vector<1x32xf32> to vector<16x32xf32>
    %57 = arith.addf %54, %56 : vector<16x32xf32>
    %cst_18 = arith.constant dense<0.000000e+00> : vector<16xf32>
    %58 = vector.multi_reduction <add>, %57, %cst_18 [1] : vector<16x32xf32> to vector<16xf32>
    %59 = vector.shape_cast %58 : vector<16xf32> to vector<16x1xf32>
    %cst_19 = arith.constant 3.200000e+01 : f32
    %60 = vector.broadcast %cst_19 : f32 to vector<16x1xf32>
    %61 = arith.divf %59, %60 : vector<16x1xf32>
    %62 = vector.broadcast %61 : vector<16x1xf32> to vector<16x32xf32>
    %63 = arith.subf %57, %62 : vector<16x32xf32>
    %64 = arith.mulf %63, %63 : vector<16x32xf32>
    %cst_20 = arith.constant dense<0.000000e+00> : vector<16xf32>
    %65 = vector.multi_reduction <add>, %64, %cst_20 [1] : vector<16x32xf32> to vector<16xf32>
    %66 = vector.shape_cast %65 : vector<16xf32> to vector<16x1xf32>
    %cst_21 = arith.constant 3.200000e+01 : f32
    %67 = vector.broadcast %cst_21 : f32 to vector<16x1xf32>
    %68 = arith.divf %66, %67 : vector<16x1xf32>
    %69 = vector.broadcast %61 : vector<16x1xf32> to vector<16x32xf32>
    %70 = arith.subf %57, %69 : vector<16x32xf32>
    %cst_22 = arith.constant 9.99999974E-6 : f32
    %71 = vector.broadcast %cst_22 : f32 to vector<16x1xf32>
    %72 = arith.addf %68, %71 : vector<16x1xf32>
    %73 = math.rsqrt %72 : vector<16x1xf32>
    %74 = vector.broadcast %73 : vector<16x1xf32> to vector<16x32xf32>
    %75 = arith.mulf %70, %74 : vector<16x32xf32>
    %c176 = arith.constant 176 : index
    %c0_23 = arith.constant 0 : index
    %76 = vector.load %arg1[%c176, %c0_23] : memref<368x128xf32, #tpu.memory_space<vmem>>, vector<32x128xf32>
    %cst_24 = arith.constant dense<0.000000e+00> : vector<16x128xf32>
    %77 = tpu.matmul %75, %76, %cst_24 {dimension_numbers = #tpu.dot_dimension_numbers<[1], [0], [0], [1], [0, 0, 1, 1], [], []>} : vector<16x32xf32>, vector<32x128xf32>, vector<16x128xf32> -> vector<16x128xf32>
    %c208 = arith.constant 208 : index
    %c0_25 = arith.constant 0 : index
    %78 = vector.load %arg1[%c208, %c0_25] : memref<368x128xf32, #tpu.memory_space<vmem>>, vector<1x128xf32>
    %79 = vector.broadcast %78 : vector<1x128xf32> to vector<16x128xf32>
    %80 = arith.addf %77, %79 : vector<16x128xf32>
    %cst_26 = arith.constant 0.000000e+00 : f32
    %81 = vector.broadcast %cst_26 : f32 to vector<16x128xf32>
    %82 = arith.maximumf %80, %81 : vector<16x128xf32>
    %c216 = arith.constant 216 : index
    %c0_27 = arith.constant 0 : index
    %83 = vector.load %arg1[%c216, %c0_27] : memref<368x128xf32, #tpu.memory_space<vmem>>, vector<128x32xf32>
    %cst_28 = arith.constant dense<0.000000e+00> : vector<16x32xf32>
    %84 = tpu.matmul %82, %83, %cst_28 {dimension_numbers = #tpu.dot_dimension_numbers<[1], [0], [0], [1], [0, 0, 1, 1], [], []>} : vector<16x128xf32>, vector<128x32xf32>, vector<16x32xf32> -> vector<16x32xf32>
    %c344 = arith.constant 344 : index
    %c0_29 = arith.constant 0 : index
    %85 = vector.load %arg1[%c344, %c0_29] : memref<368x128xf32, #tpu.memory_space<vmem>>, vector<1x32xf32>
    %86 = vector.broadcast %85 : vector<1x32xf32> to vector<16x32xf32>
    %87 = arith.addf %84, %86 : vector<16x32xf32>
    %88 = arith.addf %57, %87 : vector<16x32xf32>
    %c0_30 = arith.constant 0 : index
    %c0_31 = arith.constant 0 : index
    %89 = vector.load %arg2[%c0_30, %c0_31] : memref<16x32xf32, #tpu.memory_space<vmem>>, vector<16x32xf32>
    tpu.vector_store %arg2[%c0_30, %c0_31], %88 {strides = array<i32>} : memref<16x32xf32, #tpu.memory_space<vmem>>, vector<16x32xf32>,
    return
  }
}

</mosaic_0001>

<llo_original>
// kernel: block_forward.1
$region0: #{block_forward.1}
  #allocation0 [shape = 'u32[]', space=smem, size = 0x4, offset = 0x4, fixed_abs, tag = 'smem constant byte address 0x4 - core index']
  #allocation1 [shape = 'u32[144,128]{1,0:T(1,128)}', space=vmem, size = 0x12000, scoped, tag = 'internal scratch']
  %s0 = inlined_call_operand.hbm [shape: f32[16,32], index: 0, kind: input, shape index: {}]
  %s1 = inlined_call_operand.hbm [shape: f32[368,128], index: 1, kind: input, shape index: {}]
  %s2 = inlined_call_operand.hbm [shape: f32[16,32], index: 2, kind: output, shape index: {}]
  %s3 = sld [smem:[#allocation0]]
  $region26: #{block_forward.1} parent=0
    _
  %s5 = ssub.s32 1, %s3
  %s6 = scalar_select 0, %s5, %s3
  $region1: #{block_forward.1} parent=0
    #allocation2 [shape = 'u8[8192]{0}', space=vmem, size = 0x2000, scoped, tag = 'input window, operand 0, single buffered']
    #allocation3 [shape = 's32[1]{0}', space=sflag, size = 0x4, scoped, tag = 'scoped memory for block_forward.1']
    #allocation4 [shape = 's32[1]{0}', space=sflag, size = 0x4, scoped, tag = 'scoped memory for block_forward.1']
    #allocation5 [shape = 'u8[188416]{0}', space=vmem, size = 0x2e000, scoped, tag = 'input window, operand 1, single buffered']
    #allocation6 [shape = 's32[1]{0}', space=sflag, size = 0x4, scoped, tag = 'scoped memory for block_forward.1']
    #allocation7 [shape = 'u8[8192]{0}', space=vmem, size = 0x2000, scoped, tag = 'output window, operand 0, single buffered']
    %7 = vsyncpa [#allocation3], 0
    %8 = vsyncpa [#allocation6], 0
    %9 = vsyncpa [#allocation4], 0
    // Predicated region
    $region2: #{block_forward.1} parent=1 // pred_check
      _
    $region3: #{block_forward.1} parent=1 // pred_check_branch
      %11 = sbr.rel (0) target = $region5
    $region4: #{block_forward.1} parent=1 // pred_region
      %s13 = ssub.s32 256, 256
      %14 = vsyncadd [#allocation3], %s13
      %s15 = sshll.u32 [#allocation2], 4
      %s16 = int_to_ptr.vmem [resolvable:$true] %s15
      %21 = dma.hbm_to_vmem [thread:$0]  %s0, 256, %s16, [#allocation3], 128, 128, 8
    $region5: #{block_forward.1} parent=1 // pred_fallthru
      _
    // Predicated region
    $region6: #{block_forward.1} parent=1 // pred_check
      _
    $region7: #{block_forward.1} parent=1 // pred_check_branch
      %23 = sbr.rel (0) target = $region9
    $region8: #{block_forward.1} parent=1 // pred_region
      %s25 = ssub.s32 5888, 5888
      %26 = vsyncadd [#allocation6], %s25
      %s27 = sshll.u32 [#allocation5], 4
      %s28 = int_to_ptr.vmem [resolvable:$true] %s27
      %33 = dma.hbm_to_vmem [thread:$0]  %s1, 5888, %s28, [#allocation6], 128, 128, 8
    $region9: #{block_forward.1} parent=1 // pred_fallthru
      _
    // Predicated region
    $region10: #{block_forward.1} parent=1 // pred_check
      _
    $region11: #{block_forward.1} parent=1 // pred_check_branch
      %35 = sbr.rel (0) target = $region13
    $region12: #{block_forward.1} parent=1 // pred_region
      %36 = dma.done [#allocation3], 256
    $region13: #{block_forward.1} parent=1 // pred_fallthru
      _
    // Predicated region
    $region14: #{block_forward.1} parent=1 // pred_check
      _
    $region15: #{block_forward.1} parent=1 // pred_check_branch
      %38 = sbr.rel (0) target = $region17
    $region16: #{block_forward.1} parent=1 // pred_region
      %39 = dma.done [#allocation6], 5888
    $region17: #{block_forward.1} parent=1 // pred_fallthru
      _
    %v40 = vld [vmem:[#allocation2] sm:$0xff]
    %v41 = vld [vmem:[#allocation2 + $0x8] sm:$0xff]
    %v42 = vld [vmem:[#allocation5 + $0x80] sm:$0x3]
    %vm43 = vcmask 261120
    %v44 = vsel %vm43, %v40, 0.0
    %45 = vadd.xlane.f32.xlu0 %v44
    %v46 = vpop.xlane.xlu0 %45
    %v47 = vsel %vm43, %v41, 0.0
    %48 = vadd.xlane.f32.xlu0 %v47
    %v49 = vpop.xlane.xlu0 %48
    %v50 = vrcp.pop 32.0
    %v51 = vmul.f32 %v46, %v50
    %v52 = vmul.f32 %v49, %v50
    %v53 = vsub.f32 %v40, %v51
    %v54 = vsub.f32 %v41, %v52
    %v55 = vmul.f32 %v53, %v53
    %v56 = vmul.f32 %v54, %v54
    %v57 = vsel %vm43, %v55, 0.0
    %58 = vadd.xlane.f32.xlu0 %v57
    %v59 = vpop.xlane.xlu0 %58
    %v60 = vsel %vm43, %v56, 0.0
    %61 = vadd.xlane.f32.xlu0 %v60
    %v62 = vpop.xlane.xlu0 %61
    %v63 = vmul.f32 %v59, %v50
    %v64 = vmul.f32 %v62, %v50
    %v65 = vadd.f32 %v63, 1e-05
    %v66 = vadd.f32 %v64, 1e-05
    %v67 = vrsqrt.pop %v65
    %v68 = vrsqrt.pop %v66
    %v69 = vmul.f32 %v53, %v67
    %v70 = vmul.f32 %v54, %v68
    %v71 = vlaneseq
    %v72 = vshrl.u32 %v71, 7
    %v73 = vsub.s32 0, %v72
    %v74 = vrot.slane %v42, %v73
    %v75 = vmul.f32 %v69, %v74
    %v76 = vmul.f32 %v70, %v74
    %v77 = vlaneseq
    %v78 = vshrl.u32 %v77, 7
    %v79 = vsub.s32 1, %v78
    %v80 = vrot.slane %v42, %v79
    %v81 = vadd.f32 %v75, %v80
    %v82 = vadd.f32 %v76, %v80
    %v83 = vld [vmem:[#allocation5] sm:$0xff]
    %v84 = vld [vmem:[#allocation5 + $0x8] sm:$0xff]
    %v85 = vld [vmem:[#allocation5 + $0x10] sm:$0xff]
    %v86 = vld [vmem:[#allocation5 + $0x18] sm:$0xff]
    %v87 = vld [vmem:[#allocation5 + $0x20] sm:$0xff]
    %v88 = vld [vmem:[#allocation5 + $0x28] sm:$0xff]
    %v89 = vld [vmem:[#allocation5 + $0x30] sm:$0xff]
    %v90 = vld [vmem:[#allocation5 + $0x38] sm:$0xff]
    %v91 = vld [vmem:[#allocation5 + $0x40] sm:$0xff]
    %v92 = vld [vmem:[#allocation5 + $0x48] sm:$0xff]
    %v93 = vld [vmem:[#allocation5 + $0x50] sm:$0xff]
    %v94 = vld [vmem:[#allocation5 + $0x58] sm:$0xff]
    %v95 = vld [vmem:[#allocation5 + $0x60] sm:$0xff]
    %v96 = vld [vmem:[#allocation5 + $0x68] sm:$0xff]
    %v97 = vld [vmem:[#allocation5 + $0x70] sm:$0xff]
    %v98 = vld [vmem:[#allocation5 + $0x78] sm:$0xff]
    %v100 = vsel %vm43, %v81, 0
    %v103 = vsel %vm43, %v82, 0
    %105 = vmatprep.subr.mxu0 0.0
    %106 = vmatpush1.msra.mxu0 %v83
    %107 = vmatprep.subr.mxu0 0.0
    %108 = vmatpush1.msra.mxu0 %v84
    %109 = vmatprep.subr.mxu0 0.0
    %110 = vmatpush1.msra.mxu0 %v85
    %111 = vmatprep.subr.mxu0 0.0
    %112 = vmatpush1.msra.mxu0 %v86
    %113 = vmatprep.subr.mxu0 0.0
    %114 = vmatpush1.msra.mxu0 0.0
    %115 = vmatprep.subr.mxu0 0.0
    %116 = vmatpush1.msra.mxu0 0.0
    %117 = vmatprep.subr.mxu0 0.0
    %118 = vmatpush1.msra.mxu0 0.0
    %119 = vmatprep.subr.mxu0 0.0
    %120 = vmatpush1.msra.mxu0 0.0
    %121 = vmatprep.subr.mxu0 0.0
    %122 = vmatpush1.msra.mxu0 0.0
    %123 = vmatprep.subr.mxu0 0.0
    %124 = vmatpush1.msra.mxu0 0.0
    %125 = vmatprep.subr.mxu0 0.0
    %126 = vmatpush1.msra.mxu0 0.0
    %127 = vmatprep.subr.mxu0 0.0
    %128 = vmatpush1.msra.mxu0 0.0
    %129 = vmatprep.subr.mxu0 0.0
    %130 = vmatpush1.msra.mxu0 0.0
    %131 = vmatprep.subr.mxu0 0.0
    %132 = vmatpush1.msra.mxu0 0.0
    %133 = vmatprep.subr.mxu0 0.0
    %134 = vmatpush1.msra.mxu0 0.0
    %135 = vmatprep.subr.mxu0 0.0
    %136 = vmatpush1.msra.mxu0 0.0
    %137 = vmatprep.subr.mxu0 0.0
    %138 = vmatpush1.msra.mxu0 0.0
    %139 = vmatprep.subr.mxu0 0.0
    %140 = vmatpush1.msra.mxu0 0.0
    %141 = vmatprep.subr.mxu0 0.0
    %142 = vmatpush1.msra.mxu0 0.0
    %143 = vmatprep.subr.mxu0 0.0
    %144 = vmatpush1.msra.mxu0 0.0
    %145 = vmatprep.subr.mxu0 0.0
    %146 = vmatpush1.msra.mxu0 0.0
    %147 = vmatprep.subr.mxu0 0.0
    %148 = vmatpush1.msra.mxu0 0.0
    %149 = vmatprep.subr.mxu0 0.0
    %150 = vmatpush1.msra.mxu0 0.0
    %151 = vmatprep.subr.mxu0 0.0
    %152 = vmatpush1.msra.mxu0 0.0
    %153 = vmatprep.subr.mxu0 0.0
    %154 = vmatpush1.msra.mxu0 0.0
    %155 = vmatprep.subr.mxu0 0.0
    %156 = vmatpush1.msra.mxu0 0.0
    %157 = vmatprep.subr.mxu0 0.0
    %158 = vmatpush1.msra.mxu0 0.0
    %159 = vmatprep.subr.mxu0 0.0
    %160 = vmatpush1.msra.mxu0 0.0
    %161 = vmatprep.subr.mxu0 0.0
    %162 = vmatpush1.msra.mxu0 0.0
    %163 = vmatprep.subr.mxu0 0.0
    %164 = vmatpush1.msra.mxu0 0.0
    %165 = vmatprep.subr.mxu0 0.0
    %166 = vmatpush1.msra.mxu0 0.0
    %167 = vmatprep.subr.mxu0 0.0
    %168 = vmatpush1.msra.mxu0 0.0
    %169 = vmatprep.mubr.f32.mxu0 0.0
    %170 = vmatmul.mubr.f32.gmra.mrb[0].mxu0 %v100
    %v171 = vpop.f32.mrb[0].mxu0
    %v172 = vadd.f32 0.0, %v171
    %v173 = vpop.f32.mrb[0].mxu0
    %174 = vmatprep.mubr.f32.mxu0 0.0
    %175 = vmatmul.mubr.f32.gmra.mrb[0].mxu0 %v103
    %v176 = vpop.f32.mrb[0].mxu0
    %v177 = vadd.f32 0.0, %v176
    %v178 = vpop.f32.mrb[0].mxu0
    %179 = vdwg.mxu0
    %180 = vmatprep.subr.mxu0 0.0
    %181 = vmatpush1.msra.mxu0 %v87
    %182 = vmatprep.subr.mxu0 0.0
    %183 = vmatpush1.msra.mxu0 %v88
    %184 = vmatprep.subr.mxu0 0.0
    %185 = vmatpush1.msra.mxu0 %v89
    %186 = vmatprep.subr.mxu0 0.0
    %187 = vmatpush1.msra.mxu0 %v90
    %188 = vmatprep.subr.mxu0 0.0
    %189 = vmatpush1.msra.mxu0 0.0
    %190 = vmatprep.subr.mxu0 0.0
    %191 = vmatpush1.msra.mxu0 0.0
    %192 = vmatprep.subr.mxu0 0.0
    %193 = vmatpush1.msra.mxu0 0.0
    %194 = vmatprep.subr.mxu0 0.0
    %195 = vmatpush1.msra.mxu0 0.0
    %196 = vmatprep.subr.mxu0 0.0
    %197 = vmatpush1.msra.mxu0 0.0
    %198 = vmatprep.subr.mxu0 0.0
    %199 = vmatpush1.msra.mxu0 0.0
    %200 = vmatprep.subr.mxu0 0.0
    %201 = vmatpush1.msra.mxu0 0.0
    %202 = vmatprep.subr.mxu0 0.0
    %203 = vmatpush1.msra.mxu0 0.0
    %204 = vmatprep.subr.mxu0 0.0
    %205 = vmatpush1.msra.mxu0 0.0
    %206 = vmatprep.subr.mxu0 0.0
    %207 = vmatpush1.msra.mxu0 0.0
    %208 = vmatprep.subr.mxu0 0.0
    %209 = vmatpush1.msra.mxu0 0.0
    %210 = vmatprep.subr.mxu0 0.0
    %211 = vmatpush1.msra.mxu0 0.0
    %212 = vmatprep.subr.mxu0 0.0
    %213 = vmatpush1.msra.mxu0 0.0
    %214 = vmatprep.subr.mxu0 0.0
    %215 = vmatpush1.msra.mxu0 0.0
    %216 = vmatprep.subr.mxu0 0.0
    %217 = vmatpush1.msra.mxu0 0.0
    %218 = vmatprep.subr.mxu0 0.0
    %219 = vmatpush1.msra.mxu0 0.0
    %220 = vmatprep.subr.mxu0 0.0
    %221 = vmatpush1.msra.mxu0 0.0
    %222 = vmatprep.subr.mxu0 0.0
    %223 = vmatpush1.msra.mxu0 0.0
    %224 = vmatprep.subr.mxu0 0.0
    %225 = vmatpush1.msra.mxu0 0.0
    %226 = vmatprep.subr.mxu0 0.0
    %227 = vmatpush1.msra.mxu0 0.0
    %228 = vmatprep.subr.mxu0 0.0
    %229 = vmatpush1.msra.mxu0 0.0
    %230 = vmatprep.subr.mxu0 0.0
    %231 = vmatpush1.msra.mxu0 0.0
    %232 = vmatprep.subr.mxu0 0.0
    %233 = vmatpush1.msra.mxu0 0.0
    %234 = vmatprep.subr.mxu0 0.0
    %235 = vmatpush1.msra.mxu0 0.0
    %236 = vmatprep.subr.mxu0 0.0
    %237 = vmatpush1.msra.mxu0 0.0
    %238 = vmatprep.subr.mxu0 0.0
    %239 = vmatpush1.msra.mxu0 0.0
    %240 = vmatprep.subr.mxu0 0.0
    %241 = vmatpush1.msra.mxu0 0.0
    %242 = vmatprep.subr.mxu0 0.0
    %243 = vmatpush1.msra.mxu0 0.0
    %244 = vmatprep.mubr.f32.mxu0 0.0
    %245 = vmatmul.mubr.f32.gmra.mrb[0].mxu0 %v100
    %v246 = vpop.f32.mrb[0].mxu0
    %v247 = vadd.f32 0.0, %v246
    %v248 = vpop.f32.mrb[0].mxu0
    %249 = vmatprep.mubr.f32.mxu0 0.0
    %250 = vmatmul.mubr.f32.gmra.mrb[0].mxu0 %v103
    %v251 = vpop.f32.mrb[0].mxu0
    %v252 = vadd.f32 0.0, %v251
    %v253 = vpop.f32.mrb[0].mxu0
    %254 = vdwg.mxu0
    %255 = vmatprep.subr.mxu0 0.0
    %256 = vmatpush1.msra.mxu0 %v91
    %257 = vmatprep.subr.mxu0 0.0
    %258 = vmatpush1.msra.mxu0 %v92
    %259 = vmatprep.subr.mxu0 0.0
    %260 = vmatpush1.msra.mxu0 %v93
    %261 = vmatprep.subr.mxu0 0.0
    %262 = vmatpush1.msra.mxu0 %v94
    %263 = vmatprep.subr.mxu0 0.0
    %264 = vmatpush1.msra.mxu0 0.0
    %265 = vmatprep.subr.mxu0 0.0
    %266 = vmatpush1.msra.mxu0 0.0
    %267 = vmatprep.subr.mxu0 0.0
    %268 = vmatpush1.msra.mxu0 0.0
    %269 = vmatprep.subr.mxu0 0.0
    %270 = vmatpush1.msra.mxu0 0.0
    %271 = vmatprep.subr.mxu0 0.0
    %272 = vmatpush1.msra.mxu0 0.0
    %273 = vmatprep.subr.mxu0 0.0
    %274 = vmatpush1.msra.mxu0 0.0
    %275 = vmatprep.subr.mxu0 0.0
    %276 = vmatpush1.msra.mxu0 0.0
    %277 = vmatprep.subr.mxu0 0.0
    %278 = vmatpush1.msra.mxu0 0.0
    %279 = vmatprep.subr.mxu0 0.0
    %280 = vmatpush1.msra.mxu0 0.0
    %281 = vmatprep.subr.mxu0 0.0
    %282 = vmatpush1.msra.mxu0 0.0
    %283 = vmatprep.subr.mxu0 0.0
    %284 = vmatpush1.msra.mxu0 0.0
    %285 = vmatprep.subr.mxu0 0.0
    %286 = vmatpush1.msra.mxu0 0.0
    %287 = vmatprep.subr.mxu0 0.0
    %288 = vmatpush1.msra.mxu0 0.0
    %289 = vmatprep.subr.mxu0 0.0
    %290 = vmatpush1.msra.mxu0 0.0
    %291 = vmatprep.subr.mxu0 0.0
    %292 = vmatpush1.msra.mxu0 0.0
    %293 = vmatprep.subr.mxu0 0.0
    %294 = vmatpush1.msra.mxu0 0.0
    %295 = vmatprep.subr.mxu0 0.0
    %296 = vmatpush1.msra.mxu0 0.0
    %297 = vmatprep.subr.mxu0 0.0
    %298 = vmatpush1.msra.mxu0 0.0
    %299 = vmatprep.subr.mxu0 0.0
    %300 = vmatpush1.msra.mxu0 0.0
    %301 = vmatprep.subr.mxu0 0.0
    %302 = vmatpush1.msra.mxu0 0.0
    %303 = vmatprep.subr.mxu0 0.0
    %304 = vmatpush1.msra.mxu0 0.0
    %305 = vmatprep.subr.mxu0 0.0
    %306 = vmatpush1.msra.mxu0 0.0
    %307 = vmatprep.subr.mxu0 0.0
    %308 = vmatpush1.msra.mxu0 0.0
    %309 = vmatprep.subr.mxu0 0.0
    %310 = vmatpush1.msra.mxu0 0.0
    %311 = vmatprep.subr.mxu0 0.0
    %312 = vmatpush1.msra.mxu0 0.0
    %313 = vmatprep.subr.mxu0 0.0
    %314 = vmatpush1.msra.mxu0 0.0
    %315 = vmatprep.subr.mxu0 0.0
    %316 = vmatpush1.msra.mxu0 0.0
    %317 = vmatprep.subr.mxu0 0.0
    %318 = vmatpush1.msra.mxu0 0.0
    %319 = vmatprep.mubr.f32.mxu0 0.0
    %320 = vmatmul.mubr.f32.gmra.mrb[0].mxu0 %v100
    %v321 = vpop.f32.mrb[0].mxu0
    %v322 = vadd.f32 0.0, %v321
    %v323 = vpop.f32.mrb[0].mxu0
    %324 = vmatprep.mubr.f32.mxu0 0.0
    %325 = vmatmul.mubr.f32.gmra.mrb[0].mxu0 %v103
    %v326 = vpop.f32.mrb[0].mxu0
    %v327 = vadd.f32 0.0, %v326
    %v328 = vpop.f32.mrb[0].mxu0
    %329 = vdwg.mxu0
    %330 = vmatprep.subr.mxu0 0.0
    %331 = vmatpush1.msra.mxu0 %v95
    %332 = vmatprep.subr.mxu0 0.0
    %333 = vmatpush1.msra.mxu0 %v96
    %334 = vmatprep.subr.mxu0 0.0
    %335 = vmatpush1.msra.mxu0 %v97
    %336 = vmatprep.subr.mxu0 0.0
    %337 = vmatpush1.msra.mxu0 %v98
    %338 = vmatprep.subr.mxu0 0.0
    %339 = vmatpush1.msra.mxu0 0.0
    %340 = vmatprep.subr.mxu0 0.0
    %341 = vmatpush1.msra.mxu0 0.0
    %342 = vmatprep.subr.mxu0 0.0
    %343 = vmatpush1.msra.mxu0 0.0
    %344 = vmatprep.subr.mxu0 0.0
    %345 = vmatpush1.msra.mxu0 0.0
    %346 = vmatprep.subr.mxu0 0.0
    %347 = vmatpush1.msra.mxu0 0.0
    %348 = vmatprep.subr.mxu0 0.0
    %349 = vmatpush1.msra.mxu0 0.0
    %350 = vmatprep.subr.mxu0 0.0
    %351 = vmatpush1.msra.mxu0 0.0
    %352 = vmatprep.subr.mxu0 0.0
    %353 = vmatpush1.msra.mxu0 0.0
    %354 = vmatprep.subr.mxu0 0.0
    %355 = vmatpush1.msra.mxu0 0.0
    %356 = vmatprep.subr.mxu0 0.0
    %357 = vmatpush1.msra.mxu0 0.0
    %358 = vmatprep.subr.mxu0 0.0
    %359 = vmatpush1.msra.mxu0 0.0
    %360 = vmatprep.subr.mxu0 0.0
    %361 = vmatpush1.msra.mxu0 0.0
    %362 = vmatprep.subr.mxu0 0.0
    %363 = vmatpush1.msra.mxu0 0.0
    %364 = vmatprep.subr.mxu0 0.0
    %365 = vmatpush1.msra.mxu0 0.0
    %366 = vmatprep.subr.mxu0 0.0
    %367 = vmatpush1.msra.mxu0 0.0
    %368 = vmatprep.subr.mxu0 0.0
    %369 = vmatpush1.msra.mxu0 0.0
    %370 = vmatprep.subr.mxu0 0.0
    %371 = vmatpush1.msra.mxu0 0.0
    %372 = vmatprep.subr.mxu0 0.0
    %373 = vmatpush1.msra.mxu0 0.0
    %374 = vmatprep.subr.mxu0 0.0
    %375 = vmatpush1.msra.mxu0 0.0
    %376 = vmatprep.subr.mxu0 0.0
    %377 = vmatpush1.msra.mxu0 0.0
    %378 = vmatprep.subr.mxu0 0.0
    %379 = vmatpush1.msra.mxu0 0.0
    %380 = vmatprep.subr.mxu0 0.0
    %381 = vmatpush1.msra.mxu0 0.0
    %382 = vmatprep.subr.mxu0 0.0
    %383 = vmatpush1.msra.mxu0 0.0
    %384 = vmatprep.subr.mxu0 0.0
    %385 = vmatpush1.msra.mxu0 0.0
    %386 = vmatprep.subr.mxu0 0.0
    %387 = vmatpush1.msra.mxu0 0.0
    %388 = vmatprep.subr.mxu0 0.0
    %389 = vmatpush1.msra.mxu0 0.0
    %390 = vmatprep.subr.mxu0 0.0
    %391 = vmatpush1.msra.mxu0 0.0
    %392 = vmatprep.subr.mxu0 0.0
    %393 = vmatpush1.msra.mxu0 0.0
    %394 = vmatprep.mubr.f32.mxu0 0.0
    %395 = vmatmul.mubr.f32.gmra.mrb[0].mxu0 %v100
    %v396 = vpop.f32.mrb[0].mxu0
    %v397 = vadd.f32 0.0, %v396
    %v398 = vpop.f32.mrb[0].mxu0
    %399 = vmatprep.mubr.f32.mxu0 0.0
    %400 = vmatmul.mubr.f32.gmra.mrb[0].mxu0 %v103
    %v401 = vpop.f32.mrb[0].mxu0
    %v402 = vadd.f32 0.0, %v401
    %v403 = vpop.f32.mrb[0].mxu0
    %404 = vdwg.mxu0
    %v405 = vld [vmem:[#allocation5 + $0x160] sm:$0xff]
    %v406 = vld [vmem:[#allocation5 + $0x168] sm:$0xff]
    %409 = vrot.lane.b32.xlu0 %v172, 120
    %v410 = vpop.permute.xlu0 %409
    %411 = vrot.lane.b32.xlu0 %v177, 120
    %v412 = vpop.permute.xlu0 %411
    %vm413 = vcmask 64512
    %v414 = vsel %vm413, %v172, 0
    %v416 = vsel %vm413, %v177, 0
    %v418 = vsel %vm413, %v410, 0
    %v420 = vsel %vm413, %v412, 0
    %422 = vmatprep.subr.mxu0 0.0
    %423 = vmatpush1.xpose.msra.mxu0 %v418
    %424 = vmatprep.subr.mxu0 0.0
    %425 = vmatpush1.xpose.msra.mxu0 %v420
    %426 = vmatprep.subr.mxu0 0.0
    %427 = vmatpush1.xpose.msra.mxu0 0.0
    %428 = vmatprep.subr.mxu0 0.0
    %429 = vmatpush1.xpose.msra.mxu0 0.0
    %430 = vmatprep.subr.mxu0 0.0
    %431 = vmatpush1.xpose.msra.mxu0 0.0
    %432 = vmatprep.subr.mxu0 0.0
    %433 = vmatpush1.xpose.msra.mxu0 0.0
    %434 = vmatprep.subr.mxu0 0.0
    %435 = vmatpush1.xpose.msra.mxu0 0.0
    %436 = vmatprep.subr.mxu0 0.0
    %437 = vmatpush1.xpose.msra.mxu0 0.0
    %438 = vmatprep.subr.mxu0 0.0
    %439 = vmatpush1.xpose.msra.mxu0 0.0
    %440 = vmatprep.subr.mxu0 0.0
    %441 = vmatpush1.xpose.msra.mxu0 0.0
    %442 = vmatprep.subr.mxu0 0.0
    %443 = vmatpush1.xpose.msra.mxu0 0.0
    %444 = vmatprep.subr.mxu0 0.0
    %445 = vmatpush1.xpose.msra.mxu0 0.0
    %446 = vmatprep.subr.mxu0 0.0
    %447 = vmatpush1.xpose.msra.mxu0 0.0
    %448 = vmatprep.subr.mxu0 0.0
    %449 = vmatpush1.xpose.msra.mxu0 0.0
    %450 = vmatprep.subr.mxu0 0.0
    %451 = vmatpush1.xpose.msra.mxu0 0.0
    %452 = vmatprep.subr.mxu0 0.0
    %453 = vmatpush1.xpose.msra.mxu0 0.0
    %454 = vmatprep.subr.mxu0 0.0
    %455 = vmatpush1.xpose.msra.mxu0 0.0
    %456 = vmatprep.subr.mxu0 0.0
    %457 = vmatpush1.xpose.msra.mxu0 0.0
    %458 = vmatprep.subr.mxu0 0.0
    %459 = vmatpush1.xpose.msra.mxu0 0.0
    %460 = vmatprep.subr.mxu0 0.0
    %461 = vmatpush1.xpose.msra.mxu0 0.0
    %462 = vmatprep.subr.mxu0 0.0
    %463 = vmatpush1.xpose.msra.mxu0 0.0
    %464 = vmatprep.subr.mxu0 0.0
    %465 = vmatpush1.xpose.msra.mxu0 0.0
    %466 = vmatprep.subr.mxu0 0.0
    %467 = vmatpush1.xpose.msra.mxu0 0.0
    %468 = vmatprep.subr.mxu0 0.0
    %469 = vmatpush1.xpose.msra.mxu0 0.0
    %470 = vmatprep.subr.mxu0 0.0
    %471 = vmatpush1.xpose.msra.mxu0 0.0
    %472 = vmatprep.subr.mxu0 0.0
    %473 = vmatpush1.xpose.msra.mxu0 0.0
    %474 = vmatprep.subr.mxu0 0.0
    %475 = vmatpush1.xpose.msra.mxu0 0.0
    %476 = vmatprep.subr.mxu0 0.0
    %477 = vmatpush1.xpose.msra.mxu0 0.0
    %478 = vmatprep.subr.mxu0 0.0
    %479 = vmatpush1.xpose.msra.mxu0 0.0
    %480 = vmatprep.subr.mxu0 0.0
    %481 = vmatpush1.xpose.msra.mxu0 0.0
    %482 = vmatprep.subr.mxu0 0.0
    %483 = vmatpush1.xpose.msra.mxu0 0.0
    %484 = vmatprep.subr.mxu0 0.0
    %485 = vmatpush1.xpose.msra.mxu0 0.0
    %486 = vmatprep.mubr.f32.mxu0 0.0
    %487 = vmatmul.mubr.f32.gmra.mrb[0].mxu0 %v414
    %v488 = vpop.f32.mrb[0].mxu0
    %v489 = vadd.f32 %v405, %v488
    %v490 = vpop.f32.mrb[0].mxu0
    %491 = vmatprep.mubr.f32.mxu0 0.0
    %492 = vmatmul.mubr.f32.gmra.mrb[0].mxu0 %v416
    %v493 = vpop.f32.mrb[0].mxu0
    %v494 = vadd.f32 %v406, %v493
    %v495 = vpop.f32.mrb[0].mxu0
    %496 = vdwg.mxu0
    %499 = vrot.lane.b32.xlu0 %v247, 120
    %v500 = vpop.permute.xlu0 %499
    %501 = vrot.lane.b32.xlu0 %v252, 120
    %v502 = vpop.permute.xlu0 %501
    %v503 = vsel %vm413, %v247, 0
    %v505 = vsel %vm413, %v252, 0
    %v507 = vsel %vm413, %v500, 0
    %v509 = vsel %vm413, %v502, 0
    %511 = vmatprep.subr.mxu0 0.0
    %512 = vmatpush1.xpose.msra.mxu0 %v507
    %513 = vmatprep.subr.mxu0 0.0
    %514 = vmatpush1.xpose.msra.mxu0 %v509
    %515 = vmatprep.subr.mxu0 0.0
    %516 = vmatpush1.xpose.msra.mxu0 0.0
    %517 = vmatprep.subr.mxu0 0.0
    %518 = vmatpush1.xpose.msra.mxu0 0.0
    %519 = vmatprep.subr.mxu0 0.0
    %520 = vmatpush1.xpose.msra.mxu0 0.0
    %521 = vmatprep.subr.mxu0 0.0
    %522 = vmatpush1.xpose.msra.mxu0 0.0
    %523 = vmatprep.subr.mxu0 0.0
    %524 = vmatpush1.xpose.msra.mxu0 0.0
    %525 = vmatprep.subr.mxu0 0.0
    %526 = vmatpush1.xpose.msra.mxu0 0.0
    %527 = vmatprep.subr.mxu0 0.0
    %528 = vmatpush1.xpose.msra.mxu0 0.0
    %529 = vmatprep.subr.mxu0 0.0
    %530 = vmatpush1.xpose.msra.mxu0 0.0
    %531 = vmatprep.subr.mxu0 0.0
    %532 = vmatpush1.xpose.msra.mxu0 0.0
    %533 = vmatprep.subr.mxu0 0.0
    %534 = vmatpush1.xpose.msra.mxu0 0.0
    %535 = vmatprep.subr.mxu0 0.0
    %536 = vmatpush1.xpose.msra.mxu0 0.0
    %537 = vmatprep.subr.mxu0 0.0
    %538 = vmatpush1.xpose.msra.mxu0 0.0
    %539 = vmatprep.subr.mxu0 0.0
    %540 = vmatpush1.xpose.msra.mxu0 0.0
    %541 = vmatprep.subr.mxu0 0.0
    %542 = vmatpush1.xpose.msra.mxu0 0.0
    %543 = vmatprep.subr.mxu0 0.0
    %544 = vmatpush1.xpose.msra.mxu0 0.0
    %545 = vmatprep.subr.mxu0 0.0
    %546 = vmatpush1.xpose.msra.mxu0 0.0
    %547 = vmatprep.subr.mxu0 0.0
    %548 = vmatpush1.xpose.msra.mxu0 0.0
    %549 = vmatprep.subr.mxu0 0.0
    %550 = vmatpush1.xpose.msra.mxu0 0.0
    %551 = vmatprep.subr.mxu0 0.0
    %552 = vmatpush1.xpose.msra.mxu0 0.0
    %553 = vmatprep.subr.mxu0 0.0
    %554 = vmatpush1.xpose.msra.mxu0 0.0
    %555 = vmatprep.subr.mxu0 0.0
    %556 = vmatpush1.xpose.msra.mxu0 0.0
    %557 = vmatprep.subr.mxu0 0.0
    %558 = vmatpush1.xpose.msra.mxu0 0.0
    %559 = vmatprep.subr.mxu0 0.0
    %560 = vmatpush1.xpose.msra.mxu0 0.0
    %561 = vmatprep.subr.mxu0 0.0
    %562 = vmatpush1.xpose.msra.mxu0 0.0
    %563 = vmatprep.subr.mxu0 0.0
    %564 = vmatpush1.xpose.msra.mxu0 0.0
    %565 = vmatprep.subr.mxu0 0.0
    %566 = vmatpush1.xpose.msra.mxu0 0.0
    %567 = vmatprep.subr.mxu0 0.0
    %568 = vmatpush1.xpose.msra.mxu0 0.0
    %569 = vmatprep.subr.mxu0 0.0
    %570 = vmatpush1.xpose.msra.mxu0 0.0
    %571 = vmatprep.subr.mxu0 0.0
    %572 = vmatpush1.xpose.msra.mxu0 0.0
    %573 = vmatprep.subr.mxu0 0.0
    %574 = vmatpush1.xpose.msra.mxu0 0.0
    %575 = vmatprep.mubr.f32.mxu0 0.0
    %576 = vmatmul.mubr.f32.gmra.mrb[0].mxu0 %v503
    %v577 = vpop.f32.mrb[0].mxu0
    %v578 = vadd.f32 %v405, %v577
    %v579 = vpop.f32.mrb[0].mxu0
    %580 = vmatprep.mubr.f32.mxu0 0.0
    %581 = vmatmul.mubr.f32.gmra.mrb[0].mxu0 %v505
    %v582 = vpop.f32.mrb[0].mxu0
    %v583 = vadd.f32 %v406, %v582
    %v584 = vpop.f32.mrb[0].mxu0
    %585 = vdwg.mxu0
    %588 = vrot.lane.b32.xlu0 %v322, 120
    %v589 = vpop.permute.xlu0 %588
    %590 = vrot.lane.b32.xlu0 %v327, 120
    %v591 = vpop.permute.xlu0 %590
    %v592 = vsel %vm413, %v322, 0
    %v594 = vsel %vm413, %v327, 0
    %v596 = vsel %vm413, %v589, 0
    %v598 = vsel %vm413, %v591, 0
    %600 = vmatprep.subr.mxu0 0.0
    %601 = vmatpush1.xpose.msra.mxu0 %v596
    %602 = vmatprep.subr.mxu0 0.0
    %603 = vmatpush1.xpose.msra.mxu0 %v598
    %604 = vmatprep.subr.mxu0 0.0
    %605 = vmatpush1.xpose.msra.mxu0 0.0
    %606 = vmatprep.subr.mxu0 0.0
    %607 = vmatpush1.xpose.msra.mxu0 0.0
    %608 = vmatprep.subr.mxu0 0.0
    %609 = vmatpush1.xpose.msra.mxu0 0.0
    %610 = vmatprep.subr.mxu0 0.0
    %611 = vmatpush1.xpose.msra.mxu0 0.0
    %612 = vmatprep.subr.mxu0 0.0
    %613 = vmatpush1.xpose.msra.mxu0 0.0
    %614 = vmatprep.subr.mxu0 0.0
    %615 = vmatpush1.xpose.msra.mxu0 0.0
    %616 = vmatprep.subr.mxu0 0.0
    %617 = vmatpush1.xpose.msra.mxu0 0.0
    %618 = vmatprep.subr.mxu0 0.0
    %619 = vmatpush1.xpose.msra.mxu0 0.0
    %620 = vmatprep.subr.mxu0 0.0
    %621 = vmatpush1.xpose.msra.mxu0 0.0
    %622 = vmatprep.subr.mxu0 0.0
    %623 = vmatpush1.xpose.msra.mxu0 0.0
    %624 = vmatprep.subr.mxu0 0.0
    %625 = vmatpush1.xpose.msra.mxu0 0.0
    %626 = vmatprep.subr.mxu0 0.0
    %627 = vmatpush1.xpose.msra.mxu0 0.0
    %628 = vmatprep.subr.mxu0 0.0
    %629 = vmatpush1.xpose.msra.mxu0 0.0
    %630 = vmatprep.subr.mxu0 0.0
    %631 = vmatpush1.xpose.msra.mxu0 0.0
    %632 = vmatprep.subr.mxu0 0.0
    %633 = vmatpush1.xpose.msra.mxu0 0.0
    %634 = vmatprep.subr.mxu0 0.0
    %635 = vmatpush1.xpose.msra.mxu0 0.0
    %636 = vmatprep.subr.mxu0 0.0
    %637 = vmatpush1.xpose.msra.mxu0 0.0
    %638 = vmatprep.subr.mxu0 0.0
    %639 = vmatpush1.xpose.msra.mxu0 0.0
    %640 = vmatprep.subr.mxu0 0.0
    %641 = vmatpush1.xpose.msra.mxu0 0.0
    %642 = vmatprep.subr.mxu0 0.0
    %643 = vmatpush1.xpose.msra.mxu0 0.0
    %644 = vmatprep.subr.mxu0 0.0
    %645 = vmatpush1.xpose.msra.mxu0 0.0
    %646 = vmatprep.subr.mxu0 0.0
    %647 = vmatpush1.xpose.msra.mxu0 0.0
    %648 = vmatprep.subr.mxu0 0.0
    %649 = vmatpush1.xpose.msra.mxu0 0.0
    %650 = vmatprep.subr.mxu0 0.0
    %651 = vmatpush1.xpose.msra.mxu0 0.0
    %652 = vmatprep.subr.mxu0 0.0
    %653 = vmatpush1.xpose.msra.mxu0 0.0
    %654 = vmatprep.subr.mxu0 0.0
    %655 = vmatpush1.xpose.msra.mxu0 0.0
    %656 = vmatprep.subr.mxu0 0.0
    %657 = vmatpush1.xpose.msra.mxu0 0.0
    %658 = vmatprep.subr.mxu0 0.0
    %659 = vmatpush1.xpose.msra.mxu0 0.0
    %660 = vmatprep.subr.mxu0 0.0
    %661 = vmatpush1.xpose.msra.mxu0 0.0
    %662 = vmatprep.subr.mxu0 0.0
    %663 = vmatpush1.xpose.msra.mxu0 0.0
    %664 = vmatprep.mubr.f32.mxu0 0.0
    %665 = vmatmul.mubr.f32.gmra.mrb[0].mxu0 %v592
    %v666 = vpop.f32.mrb[0].mxu0
    %v667 = vadd.f32 %v405, %v666
    %v668 = vpop.f32.mrb[0].mxu0
    %669 = vmatprep.mubr.f32.mxu0 0.0
    %670 = vmatmul.mubr.f32.gmra.mrb[0].mxu0 %v594
    %v671 = vpop.f32.mrb[0].mxu0
    %v672 = vadd.f32 %v406, %v671
    %v673 = vpop.f32.mrb[0].mxu0
    %674 = vdwg.mxu0
    %677 = vrot.lane.b32.xlu0 %v397, 120
    %v678 = vpop.permute.xlu0 %677
    %679 = vrot.lane.b32.xlu0 %v402, 120
    %v680 = vpop.permute.xlu0 %679
    %v681 = vsel %vm413, %v397, 0
    %v683 = vsel %vm413, %v402, 0
    %v685 = vsel %vm413, %v678, 0
    %v687 = vsel %vm413, %v680, 0
    %689 = vmatprep.subr.mxu0 0.0
    %690 = vmatpush1.xpose.msra.mxu0 %v685
    %691 = vmatprep.subr.mxu0 0.0
    %692 = vmatpush1.xpose.msra.mxu0 %v687
    %693 = vmatprep.subr.mxu0 0.0
    %694 = vmatpush1.xpose.msra.mxu0 0.0
    %695 = vmatprep.subr.mxu0 0.0
    %696 = vmatpush1.xpose.msra.mxu0 0.0
    %697 = vmatprep.subr.mxu0 0.0
    %698 = vmatpush1.xpose.msra.mxu0 0.0
    %699 = vmatprep.subr.mxu0 0.0
    %700 = vmatpush1.xpose.msra.mxu0 0.0
    %701 = vmatprep.subr.mxu0 0.0
    %702 = vmatpush1.xpose.msra.mxu0 0.0
    %703 = vmatprep.subr.mxu0 0.0
    %704 = vmatpush1.xpose.msra.mxu0 0.0
    %705 = vmatprep.subr.mxu0 0.0
    %706 = vmatpush1.xpose.msra.mxu0 0.0
    %707 = vmatprep.subr.mxu0 0.0
    %708 = vmatpush1.xpose.msra.mxu0 0.0
    %709 = vmatprep.subr.mxu0 0.0
    %710 = vmatpush1.xpose.msra.mxu0 0.0
    %711 = vmatprep.subr.mxu0 0.0
    %712 = vmatpush1.xpose.msra.mxu0 0.0
    %713 = vmatprep.subr.mxu0 0.0
    %714 = vmatpush1.xpose.msra.mxu0 0.0
    %715 = vmatprep.subr.mxu0 0.0
    %716 = vmatpush1.xpose.msra.mxu0 0.0
    %717 = vmatprep.subr.mxu0 0.0
    %718 = vmatpush1.xpose.msra.mxu0 0.0
    %719 = vmatprep.subr.mxu0 0.0
    %720 = vmatpush1.xpose.msra.mxu0 0.0
    %721 = vmatprep.subr.mxu0 0.0
    %722 = vmatpush1.xpose.msra.mxu0 0.0
    %723 = vmatprep.subr.mxu0 0.0
    %724 = vmatpush1.xpose.msra.mxu0 0.0
    %725 = vmatprep.subr.mxu0 0.0
    %726 = vmatpush1.xpose.msra.mxu0 0.0
    %727 = vmatprep.subr.mxu0 0.0
    %728 = vmatpush1.xpose.msra.mxu0 0.0
    %729 = vmatprep.subr.mxu0 0.0
    %730 = vmatpush1.xpose.msra.mxu0 0.0
    %731 = vmatprep.subr.mxu0 0.0
    %732 = vmatpush1.xpose.msra.mxu0 0.0
    %733 = vmatprep.subr.mxu0 0.0
    %734 = vmatpush1.xpose.msra.mxu0 0.0
    %735 = vmatprep.subr.mxu0 0.0
    %736 = vmatpush1.xpose.msra.mxu0 0.0
    %737 = vmatprep.subr.mxu0 0.0
    %738 = vmatpush1.xpose.msra.mxu0 0.0
    %739 = vmatprep.subr.mxu0 0.0
    %740 = vmatpush1.xpose.msra.mxu0 0.0
    %741 = vmatprep.subr.mxu0 0.0
    %742 = vmatpush1.xpose.msra.mxu0 0.0
    %743 = vmatprep.subr.mxu0 0.0
    %744 = vmatpush1.xpose.msra.mxu0 0.0
    %745 = vmatprep.subr.mxu0 0.0
    %746 = vmatpush1.xpose.msra.mxu0 0.0
    %747 = vmatprep.subr.mxu0 0.0
    %748 = vmatpush1.xpose.msra.mxu0 0.0
    %749 = vmatprep.subr.mxu0 0.0
    %750 = vmatpush1.xpose.msra.mxu0 0.0
    %751 = vmatprep.subr.mxu0 0.0
    %752 = vmatpush1.xpose.msra.mxu0 0.0
    %753 = vmatprep.mubr.f32.mxu0 0.0
    %754 = vmatmul.mubr.f32.gmra.mrb[0].mxu0 %v681
    %v755 = vpop.f32.mrb[0].mxu0
    %v756 = vadd.f32 %v405, %v755
    %v757 = vpop.f32.mrb[0].mxu0
    %758 = vmatprep.mubr.f32.mxu0 0.0
    %759 = vmatmul.mubr.f32.gmra.mrb[0].mxu0 %v683
    %v760 = vpop.f32.mrb[0].mxu0
    %v761 = vadd.f32 %v406, %v760
    %v762 = vpop.f32.mrb[0].mxu0
    %763 = vdwg.mxu0
    %vm764 = vcmask 130048
    %v765 = vsel %vm764, %v489, -inf
    %766 = vmax.xlane.f32.xlu0 %v765
    %v767 = vpop.xlane.xlu0 %766
    %v768 = vsel %vm764, %v494, -inf
    %769 = vmax.xlane.f32.xlu0 %v768
    %v770 = vpop.xlane.xlu0 %769
    %v771 = vsel %vm764, %v578, -inf
    %772 = vmax.xlane.f32.xlu0 %v771
    %v773 = vpop.xlane.xlu0 %772
    %v774 = vsel %vm764, %v583, -inf
    %775 = vmax.xlane.f32.xlu0 %v774
    %v776 = vpop.xlane.xlu0 %775
    %v777 = vsel %vm764, %v667, -inf
    %778 = vmax.xlane.f32.xlu0 %v777
    %v779 = vpop.xlane.xlu0 %778
    %v780 = vsel %vm764, %v672, -inf
    %781 = vmax.xlane.f32.xlu0 %v780
    %v782 = vpop.xlane.xlu0 %781
    %v783 = vsel %vm764, %v756, -inf
    %784 = vmax.xlane.f32.xlu0 %v783
    %v785 = vpop.xlane.xlu0 %784
    %v786 = vsel %vm764, %v761, -inf
    %787 = vmax.xlane.f32.xlu0 %v786
    %v788 = vpop.xlane.xlu0 %787
    %v789 = vsub.f32 %v489, %v767
    %v790 = vsub.f32 %v494, %v770
    %v791 = vsub.f32 %v578, %v773
    %v792 = vsub.f32 %v583, %v776
    %v793 = vsub.f32 %v667, %v779
    %v794 = vsub.f32 %v672, %v782
    %v795 = vsub.f32 %v756, %v785
    %v796 = vsub.f32 %v761, %v788
    %v797 = vmul.f32 %v789, 1.442695
    %v798 = vpow.pop %v797
    %v799 = vmul.f32 %v790, 1.442695
    %v800 = vpow.pop %v799
    %v801 = vmul.f32 %v791, 1.442695
    %v802 = vpow.pop %v801
    %v803 = vmul.f32 %v792, 1.442695
    %v804 = vpow.pop %v803
    %v805 = vmul.f32 %v793, 1.442695
    %v806 = vpow.pop %v805
    %v807 = vmul.f32 %v794, 1.442695
    %v808 = vpow.pop %v807
    %v809 = vmul.f32 %v795, 1.442695
    %v810 = vpow.pop %v809
    %v811 = vmul.f32 %v796, 1.442695
    %v812 = vpow.pop %v811
    %v813 = vsel %vm764, %v798, 0.0
    %814 = vadd.xlane.f32.xlu0 %v813
    %v815 = vpop.xlane.xlu0 %814
    %v816 = vsel %vm764, %v800, 0.0
    %817 = vadd.xlane.f32.xlu0 %v816
    %v818 = vpop.xlane.xlu0 %817
    %v819 = vsel %vm764, %v802, 0.0
    %820 = vadd.xlane.f32.xlu0 %v819
    %v821 = vpop.xlane.xlu0 %820
    %v822 = vsel %vm764, %v804, 0.0
    %823 = vadd.xlane.f32.xlu0 %v822
    %v824 = vpop.xlane.xlu0 %823
    %v825 = vsel %vm764, %v806, 0.0
    %826 = vadd.xlane.f32.xlu0 %v825
    %v827 = vpop.xlane.xlu0 %826
    %v828 = vsel %vm764, %v808, 0.0
    %829 = vadd.xlane.f32.xlu0 %v828
    %v830 = vpop.xlane.xlu0 %829
    %v831 = vsel %vm764, %v810, 0.0
    %832 = vadd.xlane.f32.xlu0 %v831
    %v833 = vpop.xlane.xlu0 %832
    %v834 = vsel %vm764, %v812, 0.0
    %835 = vadd.xlane.f32.xlu0 %v834
    %v836 = vpop.xlane.xlu0 %835
    %v837 = vrcp.pop %v815
    %v838 = vrcp.pop %v818
    %v839 = vrcp.pop %v821
    %v840 = vrcp.pop %v824
    %v841 = vrcp.pop %v827
    %v842 = vrcp.pop %v830
    %v843 = vrcp.pop %v833
    %v844 = vrcp.pop %v836
    %v845 = vmul.f32 %v798, %v837
    %v846 = vmul.f32 %v800, %v838
    %v847 = vmul.f32 %v802, %v839
    %v848 = vmul.f32 %v804, %v840
    %v849 = vmul.f32 %v806, %v841
    %v850 = vmul.f32 %v808, %v842
    %v851 = vmul.f32 %v810, %v843
    %v852 = vmul.f32 %v812, %v844
    %853 = vrot.lane.b32.xlu0 %v172, 112
    %v854 = vpop.permute.xlu0 %853
    %855 = vrot.lane.b32.xlu0 %v177, 112
    %v856 = vpop.permute.xlu0 %855
    %v860 = vsel %vm764, %v845, 0
    %v863 = vsel %vm764, %v846, 0
    %865 = vmatprep.subr.mxu0 0.0
    %866 = vmatpush1.msra.mxu0 %v854
    %867 = vmatprep.subr.mxu0 0.0
    %868 = vmatpush1.msra.mxu0 %v856
    %869 = vmatprep.subr.mxu0 0.0
    %870 = vmatpush1.msra.mxu0 0.0
    %871 = vmatprep.subr.mxu0 0.0
    %872 = vmatpush1.msra.mxu0 0.0
    %873 = vmatprep.subr.mxu0 0.0
    %874 = vmatpush1.msra.mxu0 0.0
    %875 = vmatprep.subr.mxu0 0.0
    %876 = vmatpush1.msra.mxu0 0.0
    %877 = vmatprep.subr.mxu0 0.0
    %878 = vmatpush1.msra.mxu0 0.0
    %879 = vmatprep.subr.mxu0 0.0
    %880 = vmatpush1.msra.mxu0 0.0
    %881 = vmatprep.subr.mxu0 0.0
    %882 = vmatpush1.msra.mxu0 0.0
    %883 = vmatprep.subr.mxu0 0.0
    %884 = vmatpush1.msra.mxu0 0.0
    %885 = vmatprep.subr.mxu0 0.0
    %886 = vmatpush1.msra.mxu0 0.0
    %887 = vmatprep.subr.mxu0 0.0
    %888 = vmatpush1.msra.mxu0 0.0
    %889 = vmatprep.subr.mxu0 0.0
    %890 = vmatpush1.msra.mxu0 0.0
    %891 = vmatprep.subr.mxu0 0.0
    %892 = vmatpush1.msra.mxu0 0.0
    %893 = vmatprep.subr.mxu0 0.0
    %894 = vmatpush1.msra.mxu0 0.0
    %895 = vmatprep.subr.mxu0 0.0
    %896 = vmatpush1.msra.mxu0 0.0
    %897 = vmatprep.subr.mxu0 0.0
    %898 = vmatpush1.msra.mxu0 0.0
    %899 = vmatprep.subr.mxu0 0.0
    %900 = vmatpush1.msra.mxu0 0.0
    %901 = vmatprep.subr.mxu0 0.0
    %902 = vmatpush1.msra.mxu0 0.0
    %903 = vmatprep.subr.mxu0 0.0
    %904 = vmatpush1.msra.mxu0 0.0
    %905 = vmatprep.subr.mxu0 0.0
    %906 = vmatpush1.msra.mxu0 0.0
    %907 = vmatprep.subr.mxu0 0.0
    %908 = vmatpush1.msra.mxu0 0.0
    %909 = vmatprep.subr.mxu0 0.0
    %910 = vmatpush1.msra.mxu0 0.0
    %911 = vmatprep.subr.mxu0 0.0
    %912 = vmatpush1.msra.mxu0 0.0
    %913 = vmatprep.subr.mxu0 0.0
    %914 = vmatpush1.msra.mxu0 0.0
    %915 = vmatprep.subr.mxu0 0.0
    %916 = vmatpush1.msra.mxu0 0.0
    %917 = vmatprep.subr.mxu0 0.0
    %918 = vmatpush1.msra.mxu0 0.0
    %919 = vmatprep.subr.mxu0 0.0
    %920 = vmatpush1.msra.mxu0 0.0
    %921 = vmatprep.subr.mxu0 0.0
    %922 = vmatpush1.msra.mxu0 0.0
    %923 = vmatprep.subr.mxu0 0.0
    %924 = vmatpush1.msra.mxu0 0.0
    %925 = vmatprep.subr.mxu0 0.0
    %926 = vmatpush1.msra.mxu0 0.0
    %927 = vmatprep.subr.mxu0 0.0
    %928 = vmatpush1.msra.mxu0 0.0
    %929 = vmatprep.mubr.f32.mxu0 0.0
    %930 = vmatmul.mubr.f32.gmra.mrb[0].mxu0 %v860
    %v931 = vpop.f32.mrb[0].mxu0
    %v932 = vadd.f32 0.0, %v931
    %v933 = vpop.f32.mrb[0].mxu0
    %934 = vmatprep.mubr.f32.mxu0 0.0
    %935 = vmatmul.mubr.f32.gmra.mrb[0].mxu0 %v863
    %v936 = vpop.f32.mrb[0].mxu0
    %v937 = vadd.f32 0.0, %v936
    %v938 = vpop.f32.mrb[0].mxu0
    %939 = vdwg.mxu0
    %940 = vrot.lane.b32.xlu0 %v247, 112
    %v941 = vpop.permute.xlu0 %940
    %942 = vrot.lane.b32.xlu0 %v252, 112
    %v943 = vpop.permute.xlu0 %942
    %v947 = vsel %vm764, %v847, 0
    %v950 = vsel %vm764, %v848, 0
    %952 = vmatprep.subr.mxu0 0.0
    %953 = vmatpush1.msra.mxu0 %v941
    %954 = vmatprep.subr.mxu0 0.0
    %955 = vmatpush1.msra.mxu0 %v943
    %956 = vmatprep.subr.mxu0 0.0
    %957 = vmatpush1.msra.mxu0 0.0
    %958 = vmatprep.subr.mxu0 0.0
    %959 = vmatpush1.msra.mxu0 0.0
    %960 = vmatprep.subr.mxu0 0.0
    %961 = vmatpush1.msra.mxu0 0.0
    %962 = vmatprep.subr.mxu0 0.0
    %963 = vmatpush1.msra.mxu0 0.0
    %964 = vmatprep.subr.mxu0 0.0
    %965 = vmatpush1.msra.mxu0 0.0
    %966 = vmatprep.subr.mxu0 0.0
    %967 = vmatpush1.msra.mxu0 0.0
    %968 = vmatprep.subr.mxu0 0.0
    %969 = vmatpush1.msra.mxu0 0.0
    %970 = vmatprep.subr.mxu0 0.0
    %971 = vmatpush1.msra.mxu0 0.0
    %972 = vmatprep.subr.mxu0 0.0
    %973 = vmatpush1.msra.mxu0 0.0
    %974 = vmatprep.subr.mxu0 0.0
    %975 = vmatpush1.msra.mxu0 0.0
    %976 = vmatprep.subr.mxu0 0.0
    %977 = vmatpush1.msra.mxu0 0.0
    %978 = vmatprep.subr.mxu0 0.0
    %979 = vmatpush1.msra.mxu0 0.0
    %980 = vmatprep.subr.mxu0 0.0
    %981 = vmatpush1.msra.mxu0 0.0
    %982 = vmatprep.subr.mxu0 0.0
    %983 = vmatpush1.msra.mxu0 0.0
    %984 = vmatprep.subr.mxu0 0.0
    %985 = vmatpush1.msra.mxu0 0.0
    %986 = vmatprep.subr.mxu0 0.0
    %987 = vmatpush1.msra.mxu0 0.0
    %988 = vmatprep.subr.mxu0 0.0
    %989 = vmatpush1.msra.mxu0 0.0
    %990 = vmatprep.subr.mxu0 0.0
    %991 = vmatpush1.msra.mxu0 0.0
    %992 = vmatprep.subr.mxu0 0.0
    %993 = vmatpush1.msra.mxu0 0.0
    %994 = vmatprep.subr.mxu0 0.0
    %995 = vmatpush1.msra.mxu0 0.0
    %996 = vmatprep.subr.mxu0 0.0
    %997 = vmatpush1.msra.mxu0 0.0
    %998 = vmatprep.subr.mxu0 0.0
    %999 = vmatpush1.msra.mxu0 0.0
    %1000 = vmatprep.subr.mxu0 0.0
    %1001 = vmatpush1.msra.mxu0 0.0
    %1002 = vmatprep.subr.mxu0 0.0
    %1003 = vmatpush1.msra.mxu0 0.0
    %1004 = vmatprep.subr.mxu0 0.0
    %1005 = vmatpush1.msra.mxu0 0.0
    %1006 = vmatprep.subr.mxu0 0.0
    %1007 = vmatpush1.msra.mxu0 0.0
    %1008 = vmatprep.subr.mxu0 0.0
    %1009 = vmatpush1.msra.mxu0 0.0
    %1010 = vmatprep.subr.mxu0 0.0
    %1011 = vmatpush1.msra.mxu0 0.0
    %1012 = vmatprep.subr.mxu0 0.0
    %1013 = vmatpush1.msra.mxu0 0.0
    %1014 = vmatprep.subr.mxu0 0.0
    %1015 = vmatpush1.msra.mxu0 0.0
    %1016 = vmatprep.mubr.f32.mxu0 0.0
    %1017 = vmatmul.mubr.f32.gmra.mrb[0].mxu0 %v947
    %v1018 = vpop.f32.mrb[0].mxu0
    %v1019 = vadd.f32 0.0, %v1018
    %v1020 = vpop.f32.mrb[0].mxu0
    %1021 = vmatprep.mubr.f32.mxu0 0.0
    %1022 = vmatmul.mubr.f32.gmra.mrb[0].mxu0 %v950
    %v1023 = vpop.f32.mrb[0].mxu0
    %v1024 = vadd.f32 0.0, %v1023
    %v1025 = vpop.f32.mrb[0].mxu0
    %1026 = vdwg.mxu0
    %1027 = vrot.lane.b32.xlu0 %v322, 112
    %v1028 = vpop.permute.xlu0 %1027
    %1029 = vrot.lane.b32.xlu0 %v327, 112
    %v1030 = vpop.permute.xlu0 %1029
    %v1034 = vsel %vm764, %v849, 0
    %v1037 = vsel %vm764, %v850, 0
    %1039 = vmatprep.subr.mxu0 0.0
    %1040 = vmatpush1.msra.mxu0 %v1028
    %1041 = vmatprep.subr.mxu0 0.0
    %1042 = vmatpush1.msra.mxu0 %v1030
    %1043 = vmatprep.subr.mxu0 0.0
    %1044 = vmatpush1.msra.mxu0 0.0
    %1045 = vmatprep.subr.mxu0 0.0
    %1046 = vmatpush1.msra.mxu0 0.0
    %1047 = vmatprep.subr.mxu0 0.0
    %1048 = vmatpush1.msra.mxu0 0.0
    %1049 = vmatprep.subr.mxu0 0.0
    %1050 = vmatpush1.msra.mxu0 0.0
    %1051 = vmatprep.subr.mxu0 0.0
    %1052 = vmatpush1.msra.mxu0 0.0
    %1053 = vmatprep.subr.mxu0 0.0
    %1054 = vmatpush1.msra.mxu0 0.0
    %1055 = vmatprep.subr.mxu0 0.0
    %1056 = vmatpush1.msra.mxu0 0.0
    %1057 = vmatprep.subr.mxu0 0.0
    %1058 = vmatpush1.msra.mxu0 0.0
    %1059 = vmatprep.subr.mxu0 0.0
    %1060 = vmatpush1.msra.mxu0 0.0
    %1061 = vmatprep.subr.mxu0 0.0
    %1062 = vmatpush1.msra.mxu0 0.0
    %1063 = vmatprep.subr.mxu0 0.0
    %1064 = vmatpush1.msra.mxu0 0.0
    %1065 = vmatprep.subr.mxu0 0.0
    %1066 = vmatpush1.msra.mxu0 0.0
    %1067 = vmatprep.subr.mxu0 0.0
    %1068 = vmatpush1.msra.mxu0 0.0
    %1069 = vmatprep.subr.mxu0 0.0
    %1070 = vmatpush1.msra.mxu0 0.0
    %1071 = vmatprep.subr.mxu0 0.0
    %1072 = vmatpush1.msra.mxu0 0.0
    %1073 = vmatprep.subr.mxu0 0.0
    %1074 = vmatpush1.msra.mxu0 0.0
    %1075 = vmatprep.subr.mxu0 0.0
    %1076 = vmatpush1.msra.mxu0 0.0
    %1077 = vmatprep.subr.mxu0 0.0
    %1078 = vmatpush1.msra.mxu0 0.0
    %1079 = vmatprep.subr.mxu0 0.0
    %1080 = vmatpush1.msra.mxu0 0.0
    %1081 = vmatprep.subr.mxu0 0.0
    %1082 = vmatpush1.msra.mxu0 0.0
    %1083 = vmatprep.subr.mxu0 0.0
    %1084 = vmatpush1.msra.mxu0 0.0
    %1085 = vmatprep.subr.mxu0 0.0
    %1086 = vmatpush1.msra.mxu0 0.0
    %1087 = vmatprep.subr.mxu0 0.0
    %1088 = vmatpush1.msra.mxu0 0.0
    %1089 = vmatprep.subr.mxu0 0.0
    %1090 = vmatpush1.msra.mxu0 0.0
    %1091 = vmatprep.subr.mxu0 0.0
    %1092 = vmatpush1.msra.mxu0 0.0
    %1093 = vmatprep.subr.mxu0 0.0
    %1094 = vmatpush1.msra.mxu0 0.0
    %1095 = vmatprep.subr.mxu0 0.0
    %1096 = vmatpush1.msra.mxu0 0.0
    %1097 = vmatprep.subr.mxu0 0.0
    %1098 = vmatpush1.msra.mxu0 0.0
    %1099 = vmatprep.subr.mxu0 0.0
    %1100 = vmatpush1.msra.mxu0 0.0
    %1101 = vmatprep.subr.mxu0 0.0
    %1102 = vmatpush1.msra.mxu0 0.0
    %1103 = vmatprep.mubr.f32.mxu0 0.0
    %1104 = vmatmul.mubr.f32.gmra.mrb[0].mxu0 %v1034
    %v1105 = vpop.f32.mrb[0].mxu0
    %v1106 = vadd.f32 0.0, %v1105
    %v1107 = vpop.f32.mrb[0].mxu0
    %1108 = vmatprep.mubr.f32.mxu0 0.0
    %1109 = vmatmul.mubr.f32.gmra.mrb[0].mxu0 %v1037
    %v1110 = vpop.f32.mrb[0].mxu0
    %v1111 = vadd.f32 0.0, %v1110
    %v1112 = vpop.f32.mrb[0].mxu0
    %1113 = vdwg.mxu0
    %1114 = vrot.lane.b32.xlu0 %v397, 112
    %v1115 = vpop.permute.xlu0 %1114
    %1116 = vrot.lane.b32.xlu0 %v402, 112
    %v1117 = vpop.permute.xlu0 %1116
    %v1121 = vsel %vm764, %v851, 0
    %v1124 = vsel %vm764, %v852, 0
    %1126 = vmatprep.subr.mxu0 0.0
    %1127 = vmatpush1.msra.mxu0 %v1115
    %1128 = vmatprep.subr.mxu0 0.0
    %1129 = vmatpush1.msra.mxu0 %v1117
    %1130 = vmatprep.subr.mxu0 0.0
    %1131 = vmatpush1.msra.mxu0 0.0
    %1132 = vmatprep.subr.mxu0 0.0
    %1133 = vmatpush1.msra.mxu0 0.0
    %1134 = vmatprep.subr.mxu0 0.0
    %1135 = vmatpush1.msra.mxu0 0.0
    %1136 = vmatprep.subr.mxu0 0.0
    %1137 = vmatpush1.msra.mxu0 0.0
    %1138 = vmatprep.subr.mxu0 0.0
    %1139 = vmatpush1.msra.mxu0 0.0
    %1140 = vmatprep.subr.mxu0 0.0
    %1141 = vmatpush1.msra.mxu0 0.0
    %1142 = vmatprep.subr.mxu0 0.0
    %1143 = vmatpush1.msra.mxu0 0.0
    %1144 = vmatprep.subr.mxu0 0.0
    %1145 = vmatpush1.msra.mxu0 0.0
    %1146 = vmatprep.subr.mxu0 0.0
    %1147 = vmatpush1.msra.mxu0 0.0
    %1148 = vmatprep.subr.mxu0 0.0
    %1149 = vmatpush1.msra.mxu0 0.0
    %1150 = vmatprep.subr.mxu0 0.0
    %1151 = vmatpush1.msra.mxu0 0.0
    %1152 = vmatprep.subr.mxu0 0.0
    %1153 = vmatpush1.msra.mxu0 0.0
    %1154 = vmatprep.subr.mxu0 0.0
    %1155 = vmatpush1.msra.mxu0 0.0
    %1156 = vmatprep.subr.mxu0 0.0
    %1157 = vmatpush1.msra.mxu0 0.0
    %1158 = vmatprep.subr.mxu0 0.0
    %1159 = vmatpush1.msra.mxu0 0.0
    %1160 = vmatprep.subr.mxu0 0.0
    %1161 = vmatpush1.msra.mxu0 0.0
    %1162 = vmatprep.subr.mxu0 0.0
    %1163 = vmatpush1.msra.mxu0 0.0
    %1164 = vmatprep.subr.mxu0 0.0
    %1165 = vmatpush1.msra.mxu0 0.0
    %1166 = vmatprep.subr.mxu0 0.0
    %1167 = vmatpush1.msra.mxu0 0.0
    %1168 = vmatprep.subr.mxu0 0.0
    %1169 = vmatpush1.msra.mxu0 0.0
    %1170 = vmatprep.subr.mxu0 0.0
    %1171 = vmatpush1.msra.mxu0 0.0
    %1172 = vmatprep.subr.mxu0 0.0
    %1173 = vmatpush1.msra.mxu0 0.0
    %1174 = vmatprep.subr.mxu0 0.0
    %1175 = vmatpush1.msra.mxu0 0.0
    %1176 = vmatprep.subr.mxu0 0.0
    %1177 = vmatpush1.msra.mxu0 0.0
    %1178 = vmatprep.subr.mxu0 0.0
    %1179 = vmatpush1.msra.mxu0 0.0
    %1180 = vmatprep.subr.mxu0 0.0
    %1181 = vmatpush1.msra.mxu0 0.0
    %1182 = vmatprep.subr.mxu0 0.0
    %1183 = vmatpush1.msra.mxu0 0.0
    %1184 = vmatprep.subr.mxu0 0.0
    %1185 = vmatpush1.msra.mxu0 0.0
    %1186 = vmatprep.subr.mxu0 0.0
    %1187 = vmatpush1.msra.mxu0 0.0
    %1188 = vmatprep.subr.mxu0 0.0
    %1189 = vmatpush1.msra.mxu0 0.0
    %1190 = vmatprep.mubr.f32.mxu0 0.0
    %1191 = vmatmul.mubr.f32.gmra.mrb[0].mxu0 %v1121
    %v1192 = vpop.f32.mrb[0].mxu0
    %v1193 = vadd.f32 0.0, %v1192
    %v1194 = vpop.f32.mrb[0].mxu0
    %1195 = vmatprep.mubr.f32.mxu0 0.0
    %1196 = vmatmul.mubr.f32.gmra.mrb[0].mxu0 %v1124
    %v1197 = vpop.f32.mrb[0].mxu0
    %v1198 = vadd.f32 0.0, %v1197
    %v1199 = vpop.f32.mrb[0].mxu0
    %1200 = vdwg.mxu0
    %v1201 = vld [vmem:[#allocation5 + $0x88] sm:$0xff]
    %v1202 = vld [vmem:[#allocation5 + $0x90] sm:$0xff]
    %v1203 = vld [vmem:[#allocation5 + $0x98] sm:$0xff]
    %v1204 = vld [vmem:[#allocation5 + $0xa0] sm:$0xff]
    %v1206 = vsel %vm413, %v932, 0
    %v1209 = vsel %vm413, %v937, 0
    %1211 = vmatprep.subr.mxu0 0.0
    %1212 = vmatpush1.msra.mxu0 %v1201
    %1213 = vmatprep.subr.mxu0 0.0
    %1214 = vmatpush1.msra.mxu0 0.0
    %1215 = vmatprep.subr.mxu0 0.0
    %1216 = vmatpush1.msra.mxu0 0.0
    %1217 = vmatprep.subr.mxu0 0.0
    %1218 = vmatpush1.msra.mxu0 0.0
    %1219 = vmatprep.subr.mxu0 0.0
    %1220 = vmatpush1.msra.mxu0 0.0
    %1221 = vmatprep.subr.mxu0 0.0
    %1222 = vmatpush1.msra.mxu0 0.0
    %1223 = vmatprep.subr.mxu0 0.0
    %1224 = vmatpush1.msra.mxu0 0.0
    %1225 = vmatprep.subr.mxu0 0.0
    %1226 = vmatpush1.msra.mxu0 0.0
    %1227 = vmatprep.subr.mxu0 0.0
    %1228 = vmatpush1.msra.mxu0 0.0
    %1229 = vmatprep.subr.mxu0 0.0
    %1230 = vmatpush1.msra.mxu0 0.0
    %1231 = vmatprep.subr.mxu0 0.0
    %1232 = vmatpush1.msra.mxu0 0.0
    %1233 = vmatprep.subr.mxu0 0.0
    %1234 = vmatpush1.msra.mxu0 0.0
    %1235 = vmatprep.subr.mxu0 0.0
    %1236 = vmatpush1.msra.mxu0 0.0
    %1237 = vmatprep.subr.mxu0 0.0
    %1238 = vmatpush1.msra.mxu0 0.0
    %1239 = vmatprep.subr.mxu0 0.0
    %1240 = vmatpush1.msra.mxu0 0.0
    %1241 = vmatprep.subr.mxu0 0.0
    %1242 = vmatpush1.msra.mxu0 0.0
    %1243 = vmatprep.subr.mxu0 0.0
    %1244 = vmatpush1.msra.mxu0 0.0
    %1245 = vmatprep.subr.mxu0 0.0
    %1246 = vmatpush1.msra.mxu0 0.0
    %1247 = vmatprep.subr.mxu0 0.0
    %1248 = vmatpush1.msra.mxu0 0.0
    %1249 = vmatprep.subr.mxu0 0.0
    %1250 = vmatpush1.msra.mxu0 0.0
    %1251 = vmatprep.subr.mxu0 0.0
    %1252 = vmatpush1.msra.mxu0 0.0
    %1253 = vmatprep.subr.mxu0 0.0
    %1254 = vmatpush1.msra.mxu0 0.0
    %1255 = vmatprep.subr.mxu0 0.0
    %1256 = vmatpush1.msra.mxu0 0.0
    %1257 = vmatprep.subr.mxu0 0.0
    %1258 = vmatpush1.msra.mxu0 0.0
    %1259 = vmatprep.subr.mxu0 0.0
    %1260 = vmatpush1.msra.mxu0 0.0
    %1261 = vmatprep.subr.mxu0 0.0
    %1262 = vmatpush1.msra.mxu0 0.0
    %1263 = vmatprep.subr.mxu0 0.0
    %1264 = vmatpush1.msra.mxu0 0.0
    %1265 = vmatprep.subr.mxu0 0.0
    %1266 = vmatpush1.msra.mxu0 0.0
    %1267 = vmatprep.subr.mxu0 0.0
    %1268 = vmatpush1.msra.mxu0 0.0
    %1269 = vmatprep.subr.mxu0 0.0
    %1270 = vmatpush1.msra.mxu0 0.0
    %1271 = vmatprep.subr.mxu0 0.0
    %1272 = vmatpush1.msra.mxu0 0.0
    %1273 = vmatprep.subr.mxu0 0.0
    %1274 = vmatpush1.msra.mxu0 0.0
    %1275 = vmatprep.mubr.f32.mxu0 0.0
    %1276 = vmatmul.mubr.f32.gmra.mrb[0].mxu0 %v1206
    %v1277 = vpop.f32.mrb[0].mxu0
    %v1278 = vadd.f32 0.0, %v1277
    %v1279 = vpop.f32.mrb[0].mxu0
    %1280 = vmatprep.mubr.f32.mxu0 0.0
    %1281 = vmatmul.mubr.f32.gmra.mrb[0].mxu0 %v1209
    %v1282 = vpop.f32.mrb[0].mxu0
    %v1283 = vadd.f32 0.0, %v1282
    %v1284 = vpop.f32.mrb[0].mxu0
    %1285 = vdwg.mxu0
    %v1287 = vsel %vm413, %v1019, 0
    %v1290 = vsel %vm413, %v1024, 0
    %1292 = vmatprep.subr.mxu0 0.0
    %1293 = vmatpush1.msra.mxu0 %v1202
    %1294 = vmatprep.subr.mxu0 0.0
    %1295 = vmatpush1.msra.mxu0 0.0
    %1296 = vmatprep.subr.mxu0 0.0
    %1297 = vmatpush1.msra.mxu0 0.0
    %1298 = vmatprep.subr.mxu0 0.0
    %1299 = vmatpush1.msra.mxu0 0.0
    %1300 = vmatprep.subr.mxu0 0.0
    %1301 = vmatpush1.msra.mxu0 0.0
    %1302 = vmatprep.subr.mxu0 0.0
    %1303 = vmatpush1.msra.mxu0 0.0
    %1304 = vmatprep.subr.mxu0 0.0
    %1305 = vmatpush1.msra.mxu0 0.0
    %1306 = vmatprep.subr.mxu0 0.0
    %1307 = vmatpush1.msra.mxu0 0.0
    %1308 = vmatprep.subr.mxu0 0.0
    %1309 = vmatpush1.msra.mxu0 0.0
    %1310 = vmatprep.subr.mxu0 0.0
    %1311 = vmatpush1.msra.mxu0 0.0
    %1312 = vmatprep.subr.mxu0 0.0
    %1313 = vmatpush1.msra.mxu0 0.0
    %1314 = vmatprep.subr.mxu0 0.0
    %1315 = vmatpush1.msra.mxu0 0.0
    %1316 = vmatprep.subr.mxu0 0.0
    %1317 = vmatpush1.msra.mxu0 0.0
    %1318 = vmatprep.subr.mxu0 0.0
    %1319 = vmatpush1.msra.mxu0 0.0
    %1320 = vmatprep.subr.mxu0 0.0
    %1321 = vmatpush1.msra.mxu0 0.0
    %1322 = vmatprep.subr.mxu0 0.0
    %1323 = vmatpush1.msra.mxu0 0.0
    %1324 = vmatprep.subr.mxu0 0.0
    %1325 = vmatpush1.msra.mxu0 0.0
    %1326 = vmatprep.subr.mxu0 0.0
    %1327 = vmatpush1.msra.mxu0 0.0
    %1328 = vmatprep.subr.mxu0 0.0
    %1329 = vmatpush1.msra.mxu0 0.0
    %1330 = vmatprep.subr.mxu0 0.0
    %1331 = vmatpush1.msra.mxu0 0.0
    %1332 = vmatprep.subr.mxu0 0.0
    %1333 = vmatpush1.msra.mxu0 0.0
    %1334 = vmatprep.subr.mxu0 0.0
    %1335 = vmatpush1.msra.mxu0 0.0
    %1336 = vmatprep.subr.mxu0 0.0
    %1337 = vmatpush1.msra.mxu0 0.0
    %1338 = vmatprep.subr.mxu0 0.0
    %1339 = vmatpush1.msra.mxu0 0.0
    %1340 = vmatprep.subr.mxu0 0.0
    %1341 = vmatpush1.msra.mxu0 0.0
    %1342 = vmatprep.subr.mxu0 0.0
    %1343 = vmatpush1.msra.mxu0 0.0
    %1344 = vmatprep.subr.mxu0 0.0
    %1345 = vmatpush1.msra.mxu0 0.0
    %1346 = vmatprep.subr.mxu0 0.0
    %1347 = vmatpush1.msra.mxu0 0.0
    %1348 = vmatprep.subr.mxu0 0.0
    %1349 = vmatpush1.msra.mxu0 0.0
    %1350 = vmatprep.subr.mxu0 0.0
    %1351 = vmatpush1.msra.mxu0 0.0
    %1352 = vmatprep.subr.mxu0 0.0
    %1353 = vmatpush1.msra.mxu0 0.0
    %1354 = vmatprep.subr.mxu0 0.0
    %1355 = vmatpush1.msra.mxu0 0.0
    %1356 = vmatprep.mubr.f32.mxu0 0.0
    %1357 = vmatmul.mubr.f32.gmra.mrb[0].mxu0 %v1287
    %v1358 = vpop.f32.mrb[0].mxu0
    %v1359 = vadd.f32 0.0, %v1358
    %v1360 = vpop.f32.mrb[0].mxu0
    %1361 = vmatprep.mubr.f32.mxu0 0.0
    %1362 = vmatmul.mubr.f32.gmra.mrb[0].mxu0 %v1290
    %v1363 = vpop.f32.mrb[0].mxu0
    %v1364 = vadd.f32 0.0, %v1363
    %v1365 = vpop.f32.mrb[0].mxu0
    %1366 = vdwg.mxu0
    %v1368 = vsel %vm413, %v1106, 0
    %v1371 = vsel %vm413, %v1111, 0
    %1373 = vmatprep.subr.mxu0 0.0
    %1374 = vmatpush1.msra.mxu0 %v1203
    %1375 = vmatprep.subr.mxu0 0.0
    %1376 = vmatpush1.msra.mxu0 0.0
    %1377 = vmatprep.subr.mxu0 0.0
    %1378 = vmatpush1.msra.mxu0 0.0
    %1379 = vmatprep.subr.mxu0 0.0
    %1380 = vmatpush1.msra.mxu0 0.0
    %1381 = vmatprep.subr.mxu0 0.0
    %1382 = vmatpush1.msra.mxu0 0.0
    %1383 = vmatprep.subr.mxu0 0.0
    %1384 = vmatpush1.msra.mxu0 0.0
    %1385 = vmatprep.subr.mxu0 0.0
    %1386 = vmatpush1.msra.mxu0 0.0
    %1387 = vmatprep.subr.mxu0 0.0
    %1388 = vmatpush1.msra.mxu0 0.0
    %1389 = vmatprep.subr.mxu0 0.0
    %1390 = vmatpush1.msra.mxu0 0.0
    %1391 = vmatprep.subr.mxu0 0.0
    %1392 = vmatpush1.msra.mxu0 0.0
    %1393 = vmatprep.subr.mxu0 0.0
    %1394 = vmatpush1.msra.mxu0 0.0
    %1395 = vmatprep.subr.mxu0 0.0
    %1396 = vmatpush1.msra.mxu0 0.0
    %1397 = vmatprep.subr.mxu0 0.0
    %1398 = vmatpush1.msra.mxu0 0.0
    %1399 = vmatprep.subr.mxu0 0.0
    %1400 = vmatpush1.msra.mxu0 0.0
    %1401 = vmatprep.subr.mxu0 0.0
    %1402 = vmatpush1.msra.mxu0 0.0
    %1403 = vmatprep.subr.mxu0 0.0
    %1404 = vmatpush1.msra.mxu0 0.0
    %1405 = vmatprep.subr.mxu0 0.0
    %1406 = vmatpush1.msra.mxu0 0.0
    %1407 = vmatprep.subr.mxu0 0.0
    %1408 = vmatpush1.msra.mxu0 0.0
    %1409 = vmatprep.subr.mxu0 0.0
    %1410 = vmatpush1.msra.mxu0 0.0
    %1411 = vmatprep.subr.mxu0 0.0
    %1412 = vmatpush1.msra.mxu0 0.0
    %1413 = vmatprep.subr.mxu0 0.0
    %1414 = vmatpush1.msra.mxu0 0.0
    %1415 = vmatprep.subr.mxu0 0.0
    %1416 = vmatpush1.msra.mxu0 0.0
    %1417 = vmatprep.subr.mxu0 0.0
    %1418 = vmatpush1.msra.mxu0 0.0
    %1419 = vmatprep.subr.mxu0 0.0
    %1420 = vmatpush1.msra.mxu0 0.0
    %1421 = vmatprep.subr.mxu0 0.0
    %1422 = vmatpush1.msra.mxu0 0.0
    %1423 = vmatprep.subr.mxu0 0.0
    %1424 = vmatpush1.msra.mxu0 0.0
    %1425 = vmatprep.subr.mxu0 0.0
    %1426 = vmatpush1.msra.mxu0 0.0
    %1427 = vmatprep.subr.mxu0 0.0
    %1428 = vmatpush1.msra.mxu0 0.0
    %1429 = vmatprep.subr.mxu0 0.0
    %1430 = vmatpush1.msra.mxu0 0.0
    %1431 = vmatprep.subr.mxu0 0.0
    %1432 = vmatpush1.msra.mxu0 0.0
    %1433 = vmatprep.subr.mxu0 0.0
    %1434 = vmatpush1.msra.mxu0 0.0
    %1435 = vmatprep.subr.mxu0 0.0
    %1436 = vmatpush1.msra.mxu0 0.0
    %1437 = vmatprep.mubr.f32.mxu0 0.0
    %1438 = vmatmul.mubr.f32.gmra.mrb[0].mxu0 %v1368
    %v1439 = vpop.f32.mrb[0].mxu0
    %v1440 = vadd.f32 0.0, %v1439
    %v1441 = vpop.f32.mrb[0].mxu0
    %1442 = vmatprep.mubr.f32.mxu0 0.0
    %1443 = vmatmul.mubr.f32.gmra.mrb[0].mxu0 %v1371
    %v1444 = vpop.f32.mrb[0].mxu0
    %v1445 = vadd.f32 0.0, %v1444
    %v1446 = vpop.f32.mrb[0].mxu0
    %1447 = vdwg.mxu0
    %v1449 = vsel %vm413, %v1193, 0
    %v1452 = vsel %vm413, %v1198, 0
    %1454 = vmatprep.subr.mxu0 0.0
    %1455 = vmatpush1.msra.mxu0 %v1204
    %1456 = vmatprep.subr.mxu0 0.0
    %1457 = vmatpush1.msra.mxu0 0.0
    %1458 = vmatprep.subr.mxu0 0.0
    %1459 = vmatpush1.msra.mxu0 0.0
    %1460 = vmatprep.subr.mxu0 0.0
    %1461 = vmatpush1.msra.mxu0 0.0
    %1462 = vmatprep.subr.mxu0 0.0
    %1463 = vmatpush1.msra.mxu0 0.0
    %1464 = vmatprep.subr.mxu0 0.0
    %1465 = vmatpush1.msra.mxu0 0.0
    %1466 = vmatprep.subr.mxu0 0.0
    %1467 = vmatpush1.msra.mxu0 0.0
    %1468 = vmatprep.subr.mxu0 0.0
    %1469 = vmatpush1.msra.mxu0 0.0
    %1470 = vmatprep.subr.mxu0 0.0
    %1471 = vmatpush1.msra.mxu0 0.0
    %1472 = vmatprep.subr.mxu0 0.0
    %1473 = vmatpush1.msra.mxu0 0.0
    %1474 = vmatprep.subr.mxu0 0.0
    %1475 = vmatpush1.msra.mxu0 0.0
    %1476 = vmatprep.subr.mxu0 0.0
    %1477 = vmatpush1.msra.mxu0 0.0
    %1478 = vmatprep.subr.mxu0 0.0
    %1479 = vmatpush1.msra.mxu0 0.0
    %1480 = vmatprep.subr.mxu0 0.0
    %1481 = vmatpush1.msra.mxu0 0.0
    %1482 = vmatprep.subr.mxu0 0.0
    %1483 = vmatpush1.msra.mxu0 0.0
    %1484 = vmatprep.subr.mxu0 0.0
    %1485 = vmatpush1.msra.mxu0 0.0
    %1486 = vmatprep.subr.mxu0 0.0
    %1487 = vmatpush1.msra.mxu0 0.0
    %1488 = vmatprep.subr.mxu0 0.0
    %1489 = vmatpush1.msra.mxu0 0.0
    %1490 = vmatprep.subr.mxu0 0.0
    %1491 = vmatpush1.msra.mxu0 0.0
    %1492 = vmatprep.subr.mxu0 0.0
    %1493 = vmatpush1.msra.mxu0 0.0
    %1494 = vmatprep.subr.mxu0 0.0
    %1495 = vmatpush1.msra.mxu0 0.0
    %1496 = vmatprep.subr.mxu0 0.0
    %1497 = vmatpush1.msra.mxu0 0.0
    %1498 = vmatprep.subr.mxu0 0.0
    %1499 = vmatpush1.msra.mxu0 0.0
    %1500 = vmatprep.subr.mxu0 0.0
    %1501 = vmatpush1.msra.mxu0 0.0
    %1502 = vmatprep.subr.mxu0 0.0
    %1503 = vmatpush1.msra.mxu0 0.0
    %1504 = vmatprep.subr.mxu0 0.0
    %1505 = vmatpush1.msra.mxu0 0.0
    %1506 = vmatprep.subr.mxu0 0.0
    %1507 = vmatpush1.msra.mxu0 0.0
    %1508 = vmatprep.subr.mxu0 0.0
    %1509 = vmatpush1.msra.mxu0 0.0
    %1510 = vmatprep.subr.mxu0 0.0
    %1511 = vmatpush1.msra.mxu0 0.0
    %1512 = vmatprep.subr.mxu0 0.0
    %1513 = vmatpush1.msra.mxu0 0.0
    %1514 = vmatprep.subr.mxu0 0.0
    %1515 = vmatpush1.msra.mxu0 0.0
    %1516 = vmatprep.subr.mxu0 0.0
    %1517 = vmatpush1.msra.mxu0 0.0
    %1518 = vmatprep.mubr.f32.mxu0 0.0
    %1519 = vmatmul.mubr.f32.gmra.mrb[0].mxu0 %v1449
    %v1520 = vpop.f32.mrb[0].mxu0
    %v1521 = vadd.f32 0.0, %v1520
    %v1522 = vpop.f32.mrb[0].mxu0
    %1523 = vmatprep.mubr.f32.mxu0 0.0
    %1524 = vmatmul.mubr.f32.gmra.mrb[0].mxu0 %v1452
    %v1525 = vpop.f32.mrb[0].mxu0
    %v1526 = vadd.f32 0.0, %v1525
    %v1527 = vpop.f32.mrb[0].mxu0
    %1528 = vdwg.mxu0
    %v1529 = vsel %vm43, %v1278, 0.0
    %v1530 = vsel %vm43, %v1359, 0.0
    %v1531 = vadd.f32 %v1529, %v1530
    %v1532 = vsel %vm43, %v1440, 0.0
    %v1533 = vadd.f32 %v1531, %v1532
    %v1534 = vsel %vm43, %v1521, 0.0
    %v1535 = vadd.f32 %v1533, %v1534
    %v1536 = vsel %vm43, %v1283, 0.0
    %v1537 = vsel %vm43, %v1364, 0.0
    %v1538 = vadd.f32 %v1536, %v1537
    %v1539 = vsel %vm43, %v1445, 0.0
    %v1540 = vadd.f32 %v1538, %v1539
    %v1541 = vsel %vm43, %v1526, 0.0
    %v1542 = vadd.f32 %v1540, %v1541
    %v1543 = vadd.f32 %v40, %v1535
    %v1544 = vadd.f32 %v41, %v1542
    %v1545 = vld [vmem:[#allocation5 + $0xa8] sm:$0x1]
    %v1546 = vlaneseq
    %v1547 = vshrl.u32 %v1546, 7
    %v1548 = vsub.s32 0, %v1547
    %v1549 = vrot.slane %v1545, %v1548
    %v1550 = vadd.f32 %v1543, %v1549
    %v1551 = vadd.f32 %v1544, %v1549
    %v1552 = vsel %vm43, %v1550, 0.0
    %1553 = vadd.xlane.f32.xlu0 %v1552
    %v1554 = vpop.xlane.xlu0 %1553
    %v1555 = vsel %vm43, %v1551, 0.0
    %1556 = vadd.xlane.f32.xlu0 %v1555
    %v1557 = vpop.xlane.xlu0 %1556
    %v1558 = vmul.f32 %v1554, %v50
    %v1559 = vmul.f32 %v1557, %v50
    %v1560 = vsub.f32 %v1550, %v1558
    %v1561 = vsub.f32 %v1551, %v1559
    %v1562 = vmul.f32 %v1560, %v1560
    %v1563 = vmul.f32 %v1561, %v1561
    %v1564 = vsel %vm43, %v1562, 0.0
    %1565 = vadd.xlane.f32.xlu0 %v1564
    %v1566 = vpop.xlane.xlu0 %1565
    %v1567 = vsel %vm43, %v1563, 0.0
    %1568 = vadd.xlane.f32.xlu0 %v1567
    %v1569 = vpop.xlane.xlu0 %1568
    %v1570 = vmul.f32 %v1566, %v50
    %v1571 = vmul.f32 %v1569, %v50
    %v1572 = vadd.f32 %v1570, 1e-05
    %v1573 = vadd.f32 %v1571, 1e-05
    %v1574 = vrsqrt.pop %v1572
    %v1575 = vrsqrt.pop %v1573
    %v1576 = vmul.f32 %v1560, %v1574
    %v1577 = vmul.f32 %v1561, %v1575
    %v1578 = vld [vmem:[#allocation5 + $0xb0] sm:$0xff]
    %v1579 = vld [vmem:[#allocation5 + $0xb8] sm:$0xff]
    %v1580 = vld [vmem:[#allocation5 + $0xc0] sm:$0xff]
    %v1581 = vld [vmem:[#allocation5 + $0xc8] sm:$0xff]
    %v1582 = vld [vmem:[#allocation5 + $0xd0] sm:$0x1]
    %v1583 = vlaneseq
    %v1584 = vshrl.u32 %v1583, 7
    %v1585 = vsub.s32 0, %v1584
    %v1586 = vrot.slane %v1582, %v1585
    %v1588 = vsel %vm43, %v1576, 0
    %v1591 = vsel %vm43, %v1577, 0
    %1593 = vmatprep.subr.mxu0 0.0
    %1594 = vmatpush1.msra.mxu0 %v1578
    %1595 = vmatprep.subr.mxu0 0.0
    %1596 = vmatpush1.msra.mxu0 %v1579
    %1597 = vmatprep.subr.mxu0 0.0
    %1598 = vmatpush1.msra.mxu0 %v1580
    %1599 = vmatprep.subr.mxu0 0.0
    %1600 = vmatpush1.msra.mxu0 %v1581
    %1601 = vmatprep.subr.mxu0 0.0
    %1602 = vmatpush1.msra.mxu0 0.0
    %1603 = vmatprep.subr.mxu0 0.0
    %1604 = vmatpush1.msra.mxu0 0.0
    %1605 = vmatprep.subr.mxu0 0.0
    %1606 = vmatpush1.msra.mxu0 0.0
    %1607 = vmatprep.subr.mxu0 0.0
    %1608 = vmatpush1.msra.mxu0 0.0
    %1609 = vmatprep.subr.mxu0 0.0
    %1610 = vmatpush1.msra.mxu0 0.0
    %1611 = vmatprep.subr.mxu0 0.0
    %1612 = vmatpush1.msra.mxu0 0.0
    %1613 = vmatprep.subr.mxu0 0.0
    %1614 = vmatpush1.msra.mxu0 0.0
    %1615 = vmatprep.subr.mxu0 0.0
    %1616 = vmatpush1.msra.mxu0 0.0
    %1617 = vmatprep.subr.mxu0 0.0
    %1618 = vmatpush1.msra.mxu0 0.0
    %1619 = vmatprep.subr.mxu0 0.0
    %1620 = vmatpush1.msra.mxu0 0.0
    %1621 = vmatprep.subr.mxu0 0.0
    %1622 = vmatpush1.msra.mxu0 0.0
    %1623 = vmatprep.subr.mxu0 0.0
    %1624 = vmatpush1.msra.mxu0 0.0
    %1625 = vmatprep.subr.mxu0 0.0
    %1626 = vmatpush1.msra.mxu0 0.0
    %1627 = vmatprep.subr.mxu0 0.0
    %1628 = vmatpush1.msra.mxu0 0.0
    %1629 = vmatprep.subr.mxu0 0.0
    %1630 = vmatpush1.msra.mxu0 0.0
    %1631 = vmatprep.subr.mxu0 0.0
    %1632 = vmatpush1.msra.mxu0 0.0
    %1633 = vmatprep.subr.mxu0 0.0
    %1634 = vmatpush1.msra.mxu0 0.0
    %1635 = vmatprep.subr.mxu0 0.0
    %1636 = vmatpush1.msra.mxu0 0.0
    %1637 = vmatprep.subr.mxu0 0.0
    %1638 = vmatpush1.msra.mxu0 0.0
    %1639 = vmatprep.subr.mxu0 0.0
    %1640 = vmatpush1.msra.mxu0 0.0
    %1641 = vmatprep.subr.mxu0 0.0
    %1642 = vmatpush1.msra.mxu0 0.0
    %1643 = vmatprep.subr.mxu0 0.0
    %1644 = vmatpush1.msra.mxu0 0.0
    %1645 = vmatprep.subr.mxu0 0.0
    %1646 = vmatpush1.msra.mxu0 0.0
    %1647 = vmatprep.subr.mxu0 0.0
    %1648 = vmatpush1.msra.mxu0 0.0
    %1649 = vmatprep.subr.mxu0 0.0
    %1650 = vmatpush1.msra.mxu0 0.0
    %1651 = vmatprep.subr.mxu0 0.0
    %1652 = vmatpush1.msra.mxu0 0.0
    %1653 = vmatprep.subr.mxu0 0.0
    %1654 = vmatpush1.msra.mxu0 0.0
    %1655 = vmatprep.subr.mxu0 0.0
    %1656 = vmatpush1.msra.mxu0 0.0
    %1657 = vmatprep.mubr.f32.mxu0 0.0
    %1658 = vmatmul.mubr.f32.gmra.mrb[0].mxu0 %v1588
    %v1659 = vpop.f32.mrb[0].mxu0
    %v1660 = vadd.f32 %v1586, %v1659
    %v1661 = vpop.f32.mrb[0].mxu0
    %1662 = vmatprep.mubr.f32.mxu0 0.0
    %1663 = vmatmul.mubr.f32.gmra.mrb[0].mxu0 %v1591
    %v1664 = vpop.f32.mrb[0].mxu0
    %v1665 = vadd.f32 %v1586, %v1664
    %v1666 = vpop.f32.mrb[0].mxu0
    %1667 = vdwg.mxu0
    %v1668 = vmax.f32 %v1660, 0.0
    %v1669 = vmax.f32 %v1665, 0.0
    %v1670 = vld [vmem:[#allocation5 + $0xd8] sm:$0xff]
    %v1671 = vld [vmem:[#allocation5 + $0xe0] sm:$0xff]
    %v1672 = vld [vmem:[#allocation5 + $0xe8] sm:$0xff]
    %v1673 = vld [vmem:[#allocation5 + $0xf0] sm:$0xff]
    %v1674 = vld [vmem:[#allocation5 + $0xf8] sm:$0xff]
    %v1675 = vld [vmem:[#allocation5 + $0x100] sm:$0xff]
    %v1676 = vld [vmem:[#allocation5 + $0x108] sm:$0xff]
    %v1677 = vld [vmem:[#allocation5 + $0x110] sm:$0xff]
    %v1678 = vld [vmem:[#allocation5 + $0x118] sm:$0xff]
    %v1679 = vld [vmem:[#allocation5 + $0x120] sm:$0xff]
    %v1680 = vld [vmem:[#allocation5 + $0x128] sm:$0xff]
    %v1681 = vld [vmem:[#allocation5 + $0x130] sm:$0xff]
    %v1682 = vld [vmem:[#allocation5 + $0x138] sm:$0xff]
    %v1683 = vld [vmem:[#allocation5 + $0x140] sm:$0xff]
    %v1684 = vld [vmem:[#allocation5 + $0x148] sm:$0xff]
    %v1685 = vld [vmem:[#allocation5 + $0x150] sm:$0xff]
    %v1686 = vld [vmem:[#allocation5 + $0x158] sm:$0x1]
    %v1687 = vlaneseq
    %v1688 = vshrl.u32 %v1687, 7
    %v1689 = vsub.s32 0, %v1688
    %v1690 = vrot.slane %v1686, %v1689
    %1691 = vmatprep.subr.mxu0 0.0
    %1692 = vmatpush1.msra.mxu0 %v1670
    %1693 = vmatprep.subr.mxu0 0.0
    %1694 = vmatpush1.msra.mxu0 %v1671
    %1695 = vmatprep.subr.mxu0 0.0
    %1696 = vmatpush1.msra.mxu0 %v1672
    %1697 = vmatprep.subr.mxu0 0.0
    %1698 = vmatpush1.msra.mxu0 %v1673
    %1699 = vmatprep.subr.mxu0 0.0
    %1700 = vmatpush1.msra.mxu0 %v1674
    %1701 = vmatprep.subr.mxu0 0.0
    %1702 = vmatpush1.msra.mxu0 %v1675
    %1703 = vmatprep.subr.mxu0 0.0
    %1704 = vmatpush1.msra.mxu0 %v1676
    %1705 = vmatprep.subr.mxu0 0.0
    %1706 = vmatpush1.msra.mxu0 %v1677
    %1707 = vmatprep.subr.mxu0 0.0
    %1708 = vmatpush1.msra.mxu0 %v1678
    %1709 = vmatprep.subr.mxu0 0.0
    %1710 = vmatpush1.msra.mxu0 %v1679
    %1711 = vmatprep.subr.mxu0 0.0
    %1712 = vmatpush1.msra.mxu0 %v1680
    %1713 = vmatprep.subr.mxu0 0.0
    %1714 = vmatpush1.msra.mxu0 %v1681
    %1715 = vmatprep.subr.mxu0 0.0
    %1716 = vmatpush1.msra.mxu0 %v1682
    %1717 = vmatprep.subr.mxu0 0.0
    %1718 = vmatpush1.msra.mxu0 %v1683
    %1719 = vmatprep.subr.mxu0 0.0
    %1720 = vmatpush1.msra.mxu0 %v1684
    %1721 = vmatprep.subr.mxu0 0.0
    %1722 = vmatpush1.msra.mxu0 %v1685
    %1723 = vmatprep.subr.mxu0 0.0
    %1724 = vmatpush1.msra.mxu0 0.0
    %1725 = vmatprep.subr.mxu0 0.0
    %1726 = vmatpush1.msra.mxu0 0.0
    %1727 = vmatprep.subr.mxu0 0.0
    %1728 = vmatpush1.msra.mxu0 0.0
    %1729 = vmatprep.subr.mxu0 0.0
    %1730 = vmatpush1.msra.mxu0 0.0
    %1731 = vmatprep.subr.mxu0 0.0
    %1732 = vmatpush1.msra.mxu0 0.0
    %1733 = vmatprep.subr.mxu0 0.0
    %1734 = vmatpush1.msra.mxu0 0.0
    %1735 = vmatprep.subr.mxu0 0.0
    %1736 = vmatpush1.msra.mxu0 0.0
    %1737 = vmatprep.subr.mxu0 0.0
    %1738 = vmatpush1.msra.mxu0 0.0
    %1739 = vmatprep.subr.mxu0 0.0
    %1740 = vmatpush1.msra.mxu0 0.0
    %1741 = vmatprep.subr.mxu0 0.0
    %1742 = vmatpush1.msra.mxu0 0.0
    %1743 = vmatprep.subr.mxu0 0.0
    %1744 = vmatpush1.msra.mxu0 0.0
    %1745 = vmatprep.subr.mxu0 0.0
    %1746 = vmatpush1.msra.mxu0 0.0
    %1747 = vmatprep.subr.mxu0 0.0
    %1748 = vmatpush1.msra.mxu0 0.0
    %1749 = vmatprep.subr.mxu0 0.0
    %1750 = vmatpush1.msra.mxu0 0.0
    %1751 = vmatprep.subr.mxu0 0.0
    %1752 = vmatpush1.msra.mxu0 0.0
    %1753 = vmatprep.subr.mxu0 0.0
    %1754 = vmatpush1.msra.mxu0 0.0
    %1755 = vmatprep.mubr.f32.mxu0 0.0
    %1756 = vmatmul.mubr.f32.gmra.mrb[0].mxu0 %v1668
    %v1757 = vpop.f32.mrb[0].mxu0
    %v1758 = vadd.f32 %v1690, %v1757
    %v1759 = vpop.f32.mrb[0].mxu0
    %1760 = vmatprep.mubr.f32.mxu0 0.0
    %1761 = vmatmul.mubr.f32.gmra.mrb[0].mxu0 %v1669
    %v1762 = vpop.f32.mrb[0].mxu0
    %v1763 = vadd.f32 %v1690, %v1762
    %v1764 = vpop.f32.mrb[0].mxu0
    %1765 = vdwg.mxu0
    %v1766 = vadd.f32 %v1550, %v1758
    %v1767 = vadd.f32 %v1551, %v1763
    %1768 = vst.msk [vmem:[#allocation7] sm:$0xff] %vm43, %v1766
    %1769 = vst.msk [vmem:[#allocation7 + $0x8] sm:$0xff] %vm43, %v1767
    // Predicated region
    $region18: #{block_forward.1} parent=1 // pred_check
      _
    $region19: #{block_forward.1} parent=1 // pred_check_branch
      %1771 = sbr.rel (0) target = $region21
    $region20: #{block_forward.1} parent=1 // pred_region
      %s1773 = ssub.s32 256, 256
      %1774 = vsyncadd [#allocation4], %s1773
      %s1775 = sshll.u32 [#allocation7], 4
      %s1776 = int_to_ptr.vmem [resolvable:$true] %s1775
      %1781 = dma.vmem_to_hbm [thread:$0]  %s1776, 256, %s2, [#allocation4], 128, 128, 8
    $region21: #{block_forward.1} parent=1 // pred_fallthru
      _
    // Predicated region
    $region22: #{block_forward.1} parent=1 // pred_check
      _
    $region23: #{block_forward.1} parent=1 // pred_check_branch
      %1783 = sbr.rel (0) target = $region25
    $region24: #{block_forward.1} parent=1 // pred_region
      %1784 = dma.done [#allocation4], 256
    $region25: #{block_forward.1} parent=1 // pred_fallthru
      _
    %1785 = vsyncpa [#allocation3], 1
    %1786 = vsyncpa [#allocation6], 1
    %1787 = vsyncpa [#allocation4], 1

</llo_original>
